<compile_context>
chip_gen: v7x
topology: tpu7x:2x2x1
jax: 0.10.0
libtpu: 0.0.40
codegen_flags: <defaults>
</compile_context>

<pallas_src>
import functools
import numpy as np

import jax
import jax.numpy as jnp
from jax.experimental import pallas as pl
from jax.experimental.pallas import tpu as pltpu

MATMUL_DTYPE = jnp.bfloat16   # MXU operand dtype (set to jnp.float32 for exact f32 math)


def _layer_norm(x, gamma, beta, eps=1e-5):
    # torch.nn.LayerNorm: biased variance, eps=1e-5
    mean = jnp.mean(x, axis=-1, keepdims=True)
    var = jnp.mean((x - mean) ** 2, axis=-1, keepdims=True)
    return (x - mean) * jax.lax.rsqrt(var + eps) * gamma + beta


def fused_encoder_kernel(vlen_ref,                       # (Bc, 1, 1) int32
                         x_ref,                          # (Bc, S, D) f32
                         wqkv_ref,                       # (D, 3*h*d_k) bf16
                         wo_ref,                         # (h*d_k, D)  bf16
                         w1_ref,                         # (D, d_ff)   bf16
                         w2_ref,                         # (d_ff, D)   bf16
                         vecs_ref,                       # (8, C)      f32  packed small vectors
                         out_ref,                        # (Bc, S, D)  f32  (activation carry)
                         ctx_ref,                        # VMEM (Bc*S, h*d_k) f32
                         kvalid_ref,                     # VMEM (Bc, 1, S) f32  0/1
                         bias_ref,                       # VMEM (Bc, 1, S) f32  0 / -1e30
                         *, Bc, S, D, h, d_k, d_ff):
    layer = pl.program_id(1)
    n_tok = Bc * S
    HD = h * d_k
    mdt = MATMUL_DTYPE

    # ---- layer 0 (per batch chunk): seed activation carry + build mask once ----
    @pl.when(layer == 0)
    def _():
        out_ref[...] = x_ref[...]                        # activation carry lives in out block
        col = jax.lax.broadcasted_iota(jnp.int32, (Bc, 1, S), 2)
        valid = (col < vlen_ref[...]).astype(jnp.float32)          # (Bc,1,S) 0/1
        kvalid_ref[...] = valid
        bias_ref[...] = (valid - 1.0) * jnp.float32(1e30)          # finite additive mask

    x = out_ref[...].reshape(n_tok, D)                   # f32 activation (resident)

    # ---- unpack the small-vector slab (one DMA stream for all biases/LN params) ----
    vecs = vecs_ref[...]                                 # (8, C) f32
    bqkv = vecs[0:1, :3 * HD]
    bo   = vecs[1:2, :D]
    g1   = vecs[2:3, :D]
    be1  = vecs[3:4, :D]
    b1   = vecs[4:5, :d_ff]
    b2   = vecs[5:6, :D]
    g2   = vecs[6:7, :D]
    be2  = vecs[7:8, :D]

    # ---- fused lane-dense Q/K/V projection: one (n_tok, D) @ (D, 3*h*d_k) matmul ----
    qkv = jnp.dot(x.astype(mdt), wqkv_ref[...],
                  preferred_element_type=jnp.float32) + bqkv       # (n_tok, 3*HD) f32
    qkv = qkv.astype(mdt)                                          # single cast for all heads

    kvalid = kvalid_ref[...]                              # (Bc,1,S)
    bias = bias_ref[...]                                  # (Bc,1,S)
    scale = jnp.float32(1.0 / np.sqrt(d_k))

    # ---- per-example attention, heads as a tiny static loop (b folded into batch dim) ----
    for hh in range(h):
        q = qkv[:, hh * d_k:(hh + 1) * d_k].reshape(Bc, S, d_k)
        k = qkv[:, HD + hh * d_k:HD + (hh + 1) * d_k].reshape(Bc, S, d_k)
        v = qkv[:, 2 * HD + hh * d_k:2 * HD + (hh + 1) * d_k].reshape(Bc, S, d_k)
        s = jnp.einsum('bqd,bkd->bqk', q, k,
                       preferred_element_type=jnp.float32) * scale + bias    # (Bc,S,S)
        m = jnp.max(s, axis=-1, keepdims=True)
        e = jnp.exp(s - m) * kvalid                       # masked keys -> exactly 0
        denom = jnp.sum(e, axis=-1, keepdims=True)        # (Bc,S,1)
        ctx = jnp.einsum('bqk,bkd->bqd', e.astype(mdt), v,
                         preferred_element_type=jnp.float32)
        # deferred softmax normalization (EUP); guarded denom keeps fully masked rows
        # at exactly 0 (matches torch's post-softmax masked_fill(mask, 0)).
        ctx = ctx * pl.reciprocal(denom + jnp.float32(1e-30), approx=True)
        ctx_ref[:, hh * d_k:(hh + 1) * d_k] = ctx.reshape(n_tok, d_k)        # concat heads

    # ---- output projection: ONE (n_tok, h*d_k) @ (h*d_k, D) matmul ----
    att = jnp.dot(ctx_ref[...].astype(mdt), wo_ref[...],
                  preferred_element_type=jnp.float32) + bo

    # ---- residual + LayerNorm (f32) ----
    y = _layer_norm(x + att, g1, be1)

    # ---- position-wise FFN -> residual + LayerNorm ----
    hdn = jnp.maximum(
        jnp.dot(y.astype(mdt), w1_ref[...], preferred_element_type=jnp.float32) + b1, 0.0)
    ff = jnp.dot(hdn.astype(mdt), w2_ref[...], preferred_element_type=jnp.float32) + b2
    z = _layer_norm(y + ff, g2, be2)

    out_ref[...] = z.reshape(Bc, S, D)                    # carry to the next layer


def base_encoder(x, valid_len, packed, *, h, batch_splits=1):
    """x: (B,S,D) f32, valid_len: (B,) int32 (keys >= valid_len[b] are masked),
    packed: stacked/fused per-layer params from pack_params().
    batch_splits: leading 'parallel' grid axis (set 2 on v7x to use both TensorCores)."""
    B, S, D = x.shape
    assert D % h == 0
    d_k = D // h
    HD = h * d_k
    L = packed["wqkv"].shape[0]
    d_ff = packed["w1"].shape[-1]
    C = packed["vecs"].shape[-1]
    assert B % batch_splits == 0
    Bc = B // batch_splits
    assert S % 8 == 0, "S must be a multiple of 8 (f32 sublane) for layout-free reshapes"

    vlen = valid_len.astype(jnp.int32).reshape(B, 1, 1)

    def per_layer(shape):                  # leading (squeezed) layer axis, pinned over batch
        n = len(shape)
        return pl.BlockSpec((None,) + shape, lambda c, l: (l,) + (0,) * n)

    in_specs = [
        pl.BlockSpec((Bc, 1, 1), lambda c, l: (c, 0, 0)),        # valid_len
        pl.BlockSpec((Bc, S, D), lambda c, l: (c, 0, 0)),        # x
        per_layer((D, 3 * HD)),                                  # wqkv (fused Wq|Wk|Wv)
        per_layer((HD, D)),                                      # wo
        per_layer((D, d_ff)),                                    # w1
        per_layer((d_ff, D)),                                    # w2
        per_layer((8, C)),                                       # packed small vectors
    ]

    kernel = functools.partial(fused_encoder_kernel,
                               Bc=Bc, S=S, D=D, h=h, d_k=d_k, d_ff=d_ff)
    return pl.pallas_call(
        kernel,
        out_shape=jax.ShapeDtypeStruct((B, S, D), jnp.float32),
        grid_spec=pltpu.PrefetchScalarGridSpec(
            num_scalar_prefetch=0,
            grid=(batch_splits, L),                      # batch chunks x layers
            in_specs=in_specs,
            out_specs=pl.BlockSpec((Bc, S, D), lambda c, l: (c, 0, 0)),
            scratch_shapes=[pltpu.VMEM((Bc * S, HD), jnp.float32),   # concat-head context
                            pltpu.VMEM((Bc, 1, S), jnp.float32),     # 0/1 key-valid
                            pltpu.VMEM((Bc, 1, S), jnp.float32)]),   # additive bias
        compiler_params=pltpu.CompilerParams(
            dimension_semantics=("parallel", "arbitrary"),   # layers are sequentially dependent
            vmem_limit_bytes=64 * 1024 * 1024),
    )(vlen, x, packed["wqkv"], packed["wo"], packed["w1"], packed["w2"], packed["vecs"])


def init_layer_params(key, d_model, h, d_ff):
    d_k = d_model // h
    ks = jax.random.split(key, 8)
    # xavier_normal for attention projections (gain=1.0), zero biases (init_weights);
    # torch-default uniform init for the FFN Linears.
    xav = np.float32(np.sqrt(2.0 / (d_model + h * d_k)))
    s1 = np.float32(1.0 / np.sqrt(d_model))
    s2 = np.float32(1.0 / np.sqrt(d_ff))
    z = lambda n: jnp.zeros((1, n), jnp.float32)
    o = lambda n: jnp.ones((1, n), jnp.float32)
    return {
        "wq": xav * jax.random.normal(ks[0], (d_model, h * d_k), jnp.float32), "bq": z(h * d_k),
        "wk": xav * jax.random.normal(ks[1], (d_model, h * d_k), jnp.float32), "bk": z(h * d_k),
        "wv": xav * jax.random.normal(ks[2], (d_model, h * d_k), jnp.float32), "bv": z(h * d_k),
        "wo": xav * jax.random.normal(ks[3], (h * d_k, d_model), jnp.float32), "bo": z(d_model),
        "g1": o(d_model), "be1": z(d_model),
        "w1": s1 * jax.random.uniform(ks[4], (d_model, d_ff), jnp.float32, -1.0, 1.0),
        "b1": s1 * jax.random.uniform(ks[5], (1, d_ff), jnp.float32, -1.0, 1.0),
        "w2": s2 * jax.random.uniform(ks[6], (d_ff, d_model), jnp.float32, -1.0, 1.0),
        "b2": s2 * jax.random.uniform(ks[7], (1, d_model), jnp.float32, -1.0, 1.0),
        "g2": o(d_model), "be2": z(d_model),
    }


def pack_params(layer_params, *, h):
    """Stack per-layer params on a leading layer axis. Wq|Wk|Wv are fused into one
    lane-dense (D, 3*h*d_k) projection weight; matmul weights are pre-cast to bf16
    (f32 accumulation on the MXU); all small vectors (biases, LN gammas/betas) are
    packed into one (L, 8, C) f32 slab so the kernel has a single small DMA stream."""
    L = len(layer_params)
    stk = lambda name: jnp.stack([p[name] for p in layer_params], axis=0)
    wq, wk, wv = stk("wq"), stk("wk"), stk("wv")          # (L, D, h*d_k)
    D = wq.shape[1]
    HD = wq.shape[2]
    w1 = stk("w1")
    d_ff = w1.shape[-1]

    wqkv = jnp.concatenate([wq, wk, wv], axis=-1).astype(MATMUL_DTYPE)   # (L, D, 3*HD)

    C = max(3 * HD, d_ff, D)

    def row(a, n):                                        # (L,1,n) -> (L,C) zero-padded
        a2 = a.reshape(L, n).astype(jnp.float32)
        return jnp.pad(a2, ((0, 0), (0, C - n)))

    bqkv = jnp.concatenate([stk("bq"), stk("bk"), stk("bv")], axis=-1)   # (L,1,3*HD)
    vecs = jnp.stack([
        row(bqkv, 3 * HD),
        row(stk("bo"), D),
        row(stk("g1"), D),
        row(stk("be1"), D),
        row(stk("b1"), d_ff),
        row(stk("b2"), D),
        row(stk("g2"), D),
        row(stk("be2"), D),
    ], axis=1)                                            # (L, 8, C) f32

    return {
        "wqkv": wqkv,
        "wo": stk("wo").astype(MATMUL_DTYPE),             # (L, HD, D)
        "w1": w1.astype(MATMUL_DTYPE),                    # (L, D, d_ff)
        "w2": stk("w2").astype(MATMUL_DTYPE),             # (L, d_ff, D)
        "vecs": vecs,
    }


if __name__ == "__main__":
    # config: d_model=32, h=4 (d_att = 32/4 = 8), d_ff=64, N=2 layers, eval mode
    B, S, d_model, h, d_ff, N = 2, 8, 32, 4, 64, 2

    key = jax.random.PRNGKey(0)
    k_in, k_par = jax.random.split(key)
    x = jax.random.normal(k_in, (B, S, d_model), jnp.float32)

    # per-example valid key lengths (replaces the (B,H,S,S) bool mask:
    # key j is masked for example b iff j >= valid_len[b])
    valid_len = jnp.array([S, S - 2], jnp.int32)

    layer_params = [init_layer_params(jax.random.fold_in(k_par, i), d_model, h, d_ff)
                    for i in range(N)]
    packed = pack_params(layer_params, h=h)

    # batch_splits=2: exercises the leading "parallel" grid axis (both TCs on v7x;
    # plain sequential chunks on single-TC v5e/v6e).
    out = base_encoder(x, valid_len, packed, h=h, batch_splits=2)
    out = jax.block_until_ready(out)
    assert out.shape == (B, S, d_model)
    assert bool(jnp.all(jnp.isfinite(out)))
    print("KERNEL_OK")
</pallas_src>

<mosaic_0001>
module attributes {stable_mosaic.version = 11 : i64} {
  func.func @fused_encoder_kernel(%arg0: i32, %arg1: i32, %arg2: memref<1x1x1xi32, #tpu.memory_space<vmem>>, %arg3: memref<1x8x32xf32, #tpu.memory_space<vmem>>, %arg4: memref<1x32x96xbf16, #tpu.memory_space<vmem>>, %arg5: memref<1x32x32xbf16, #tpu.memory_space<vmem>>, %arg6: memref<1x32x64xbf16, #tpu.memory_space<vmem>>, %arg7: memref<1x64x32xbf16, #tpu.memory_space<vmem>>, %arg8: memref<1x8x96xf32, #tpu.memory_space<vmem>>, %arg9: memref<1x8x32xf32, #tpu.memory_space<vmem>>, %arg10: memref<8x32xf32, #tpu.memory_space<vmem>>, %arg11: memref<1x1x8xf32, #tpu.memory_space<vmem>>, %arg12: memref<1x1x8xf32, #tpu.memory_space<vmem>>) attributes {dimension_semantics = [#tpu.dimension_semantics<parallel>, #tpu.dimension_semantics<arbitrary>], iteration_bounds = array<i64: 2, 2>, scalar_prefetch = 0 : i64, scratch_operands = 3 : i64, tpu.core_type = #tpu.core_type<tc>, window_params = [{transform_indices = @transform_0, window_bounds = array<i64: 1, 1, 1>}, {transform_indices = @transform_1, window_bounds = array<i64: 1, 8, 32>}, {transform_indices = @transform_2, window_bounds = array<i64: 1, 32, 96>}, {transform_indices = @transform_3, window_bounds = array<i64: 1, 32, 32>}, {transform_indices = @transform_4, window_bounds = array<i64: 1, 32, 64>}, {transform_indices = @transform_5, window_bounds = array<i64: 1, 64, 32>}, {transform_indices = @transform_6, window_bounds = array<i64: 1, 8, 96>}, {transform_indices = @transform_7, window_bounds = array<i64: 1, 8, 32>}]} {
    %c0_i32 = arith.constant 0 : i32
    %0 = arith.cmpi eq, %arg1, %c0_i32 : i32
    %1 = arith.extui %0 : i1 to i32
    %c0_i32_0 = arith.constant 0 : i32
    %2 = arith.cmpi ne, %1, %c0_i32_0 : i32
    scf.if %2 {
      %c0_72 = arith.constant 0 : index
      %c0_73 = arith.constant 0 : index
      %c0_74 = arith.constant 0 : index
      %209 = vector.load %arg3[%c0_72, %c0_73, %c0_74] : memref<1x8x32xf32, #tpu.memory_space<vmem>>, vector<1x8x32xf32>
      %c0_75 = arith.constant 0 : index
      %c0_76 = arith.constant 0 : index
      %c0_77 = arith.constant 0 : index
      %210 = vector.load %arg9[%c0_75, %c0_76, %c0_77] : memref<1x8x32xf32, #tpu.memory_space<vmem>>, vector<1x8x32xf32>
      tpu.vector_store %arg9[%c0_75, %c0_76, %c0_77], %209 {strides = array<i32>} : memref<1x8x32xf32, #tpu.memory_space<vmem>>, vector<1x8x32xf32>,
      %211 = tpu.iota {dimensions = array<i32: 2>} : vector<1x1x8xi32>
      %c0_78 = arith.constant 0 : index
      %c0_79 = arith.constant 0 : index
      %c0_80 = arith.constant 0 : index
      %212 = vector.load %arg2[%c0_78, %c0_79, %c0_80] : memref<1x1x1xi32, #tpu.memory_space<vmem>>, vector<1x1x1xi32>
      %213 = vector.broadcast %212 : vector<1x1x1xi32> to vector<1x1x8xi32>
      %214 = arith.cmpi slt, %211, %213 : vector<1x1x8xi32>
      %215 = arith.extui %214 : vector<1x1x8xi1> to vector<1x1x8xi32>
      %216 = arith.sitofp %215 : vector<1x1x8xi32> to vector<1x1x8xf32>
      %c0_81 = arith.constant 0 : index
      %c0_82 = arith.constant 0 : index
      %c0_83 = arith.constant 0 : index
      %217 = vector.load %arg11[%c0_81, %c0_82, %c0_83] : memref<1x1x8xf32, #tpu.memory_space<vmem>>, vector<1x1x8xf32>
      tpu.vector_store %arg11[%c0_81, %c0_82, %c0_83], %216 {strides = array<i32>} : memref<1x1x8xf32, #tpu.memory_space<vmem>>, vector<1x1x8xf32>,
      %cst_84 = arith.constant 1.000000e+00 : f32
      %218 = vector.broadcast %cst_84 : f32 to vector<1x1x8xf32>
      %219 = arith.subf %216, %218 : vector<1x1x8xf32>
      %cst_85 = arith.constant 1.000000e+30 : f32
      %220 = vector.broadcast %cst_85 : f32 to vector<1x1x8xf32>
      %221 = arith.mulf %219, %220 : vector<1x1x8xf32>
      %c0_86 = arith.constant 0 : index
      %c0_87 = arith.constant 0 : index
      %c0_88 = arith.constant 0 : index
      %222 = vector.load %arg12[%c0_86, %c0_87, %c0_88] : memref<1x1x8xf32, #tpu.memory_space<vmem>>, vector<1x1x8xf32>
      tpu.vector_store %arg12[%c0_86, %c0_87, %c0_88], %221 {strides = array<i32>} : memref<1x1x8xf32, #tpu.memory_space<vmem>>, vector<1x1x8xf32>,
    } else {
    }
    %c0 = arith.constant 0 : index
    %c0_1 = arith.constant 0 : index
    %c0_2 = arith.constant 0 : index
    %3 = vector.load %arg9[%c0, %c0_1, %c0_2] : memref<1x8x32xf32, #tpu.memory_space<vmem>>, vector<1x8x32xf32>
    %4 = vector.shape_cast %3 : vector<1x8x32xf32> to vector<8x32xf32>
    %c0_3 = arith.constant 0 : index
    %c0_4 = arith.constant 0 : index
    %c0_5 = arith.constant 0 : index
    %5 = vector.load %arg8[%c0_3, %c0_4, %c0_5] : memref<1x8x96xf32, #tpu.memory_space<vmem>>, vector<1x8x96xf32>
    %6 = vector.shape_cast %5 : vector<1x8x96xf32> to vector<8x96xf32>
    %7 = vector.extract_strided_slice %6 {offsets = [0, 0], sizes = [1, 96], strides = [1, 1]} : vector<8x96xf32> to vector<1x96xf32>
    %8 = vector.extract_strided_slice %6 {offsets = [1, 0], sizes = [1, 32], strides = [1, 1]} : vector<8x96xf32> to vector<1x32xf32>
    %9 = vector.extract_strided_slice %6 {offsets = [2, 0], sizes = [1, 32], strides = [1, 1]} : vector<8x96xf32> to vector<1x32xf32>
    %10 = vector.extract_strided_slice %6 {offsets = [3, 0], sizes = [1, 32], strides = [1, 1]} : vector<8x96xf32> to vector<1x32xf32>
    %11 = vector.extract_strided_slice %6 {offsets = [4, 0], sizes = [1, 64], strides = [1, 1]} : vector<8x96xf32> to vector<1x64xf32>
    %12 = vector.extract_strided_slice %6 {offsets = [5, 0], sizes = [1, 32], strides = [1, 1]} : vector<8x96xf32> to vector<1x32xf32>
    %13 = vector.extract_strided_slice %6 {offsets = [6, 0], sizes = [1, 32], strides = [1, 1]} : vector<8x96xf32> to vector<1x32xf32>
    %14 = vector.extract_strided_slice %6 {offsets = [7, 0], sizes = [1, 32], strides = [1, 1]} : vector<8x96xf32> to vector<1x32xf32>
    %15 = arith.truncf %4 : vector<8x32xf32> to vector<8x32xbf16>
    %c0_6 = arith.constant 0 : index
    %c0_7 = arith.constant 0 : index
    %c0_8 = arith.constant 0 : index
    %16 = vector.load %arg4[%c0_6, %c0_7, %c0_8] : memref<1x32x96xbf16, #tpu.memory_space<vmem>>, vector<1x32x96xbf16>
    %17 = vector.shape_cast %16 : vector<1x32x96xbf16> to vector<32x96xbf16>
    %cst = arith.constant dense<0.000000e+00> : vector<8x96xf32>
    %18 = tpu.matmul %15, %17, %cst {dimension_numbers = #tpu.dot_dimension_numbers<[1], [0], [0], [1], [0, 0, 1, 1], [], []>} : vector<8x32xbf16>, vector<32x96xbf16>, vector<8x96xf32> -> vector<8x96xf32>
    %19 = vector.broadcast %7 : vector<1x96xf32> to vector<8x96xf32>
    %20 = arith.addf %18, %19 : vector<8x96xf32>
    %21 = arith.truncf %20 : vector<8x96xf32> to vector<8x96xbf16>
    %c0_9 = arith.constant 0 : index
    %c0_10 = arith.constant 0 : index
    %c0_11 = arith.constant 0 : index
    %22 = vector.load %arg11[%c0_9, %c0_10, %c0_11] : memref<1x1x8xf32, #tpu.memory_space<vmem>>, vector<1x1x8xf32>
    %c0_12 = arith.constant 0 : index
    %c0_13 = arith.constant 0 : index
    %c0_14 = arith.constant 0 : index
    %23 = vector.load %arg12[%c0_12, %c0_13, %c0_14] : memref<1x1x8xf32, #tpu.memory_space<vmem>>, vector<1x1x8xf32>
    %24 = vector.extract_strided_slice %21 {offsets = [0, 0], sizes = [8, 8], strides = [1, 1]} : vector<8x96xbf16> to vector<8x8xbf16>
    %25 = vector.shape_cast %24 : vector<8x8xbf16> to vector<1x8x8xbf16>
    %26 = vector.extract_strided_slice %21 {offsets = [0, 32], sizes = [8, 8], strides = [1, 1]} : vector<8x96xbf16> to vector<8x8xbf16>
    %27 = vector.shape_cast %26 : vector<8x8xbf16> to vector<1x8x8xbf16>
    %28 = vector.extract_strided_slice %21 {offsets = [0, 64], sizes = [8, 8], strides = [1, 1]} : vector<8x96xbf16> to vector<8x8xbf16>
    %29 = vector.shape_cast %28 : vector<8x8xbf16> to vector<1x8x8xbf16>
    "tpu.trace_start"() <{level = 10 : i32, message = "bqd,bkd->bqk"}> : () -> ()
    %cst_15 = arith.constant dense<0.000000e+00> : vector<1x8x8xf32>
    %30 = tpu.matmul %25, %27, %cst_15 {dimension_numbers = #tpu.dot_dimension_numbers<[2], [2], [1], [1], [0, 0, 0, 1, 1, 1], [0], [0]>} : vector<1x8x8xbf16>, vector<1x8x8xbf16>, vector<1x8x8xf32> -> vector<1x8x8xf32>
    "tpu.trace_stop"() : () -> ()
    %cst_16 = arith.constant 0.353553385 : f32
    %31 = vector.broadcast %cst_16 : f32 to vector<1x8x8xf32>
    %32 = arith.mulf %30, %31 : vector<1x8x8xf32>
    %33 = vector.broadcast %23 : vector<1x1x8xf32> to vector<1x8x8xf32>
    %34 = arith.addf %32, %33 : vector<1x8x8xf32>
    %cst_17 = arith.constant dense<0xFF800000> : vector<1x8xf32>
    %35 = vector.multi_reduction <maximumf>, %34, %cst_17 [2] : vector<1x8x8xf32> to vector<1x8xf32>
    %36 = vector.shape_cast %35 : vector<1x8xf32> to vector<1x8x1xf32>
    %37 = vector.broadcast %36 : vector<1x8x1xf32> to vector<1x8x8xf32>
    %38 = arith.subf %34, %37 : vector<1x8x8xf32>
    %39 = math.exp %38 : vector<1x8x8xf32>
    %40 = vector.broadcast %22 : vector<1x1x8xf32> to vector<1x8x8xf32>
    %41 = arith.mulf %39, %40 : vector<1x8x8xf32>
    %cst_18 = arith.constant dense<0.000000e+00> : vector<1x8xf32>
    %42 = vector.multi_reduction <add>, %41, %cst_18 [2] : vector<1x8x8xf32> to vector<1x8xf32>
    %43 = vector.shape_cast %42 : vector<1x8xf32> to vector<1x8x1xf32>
    %44 = arith.truncf %41 : vector<1x8x8xf32> to vector<1x8x8xbf16>
    "tpu.trace_start"() <{level = 10 : i32, message = "bqk,bkd->bqd"}> : () -> ()
    %cst_19 = arith.constant dense<0.000000e+00> : vector<1x8x8xf32>
    %45 = tpu.matmul %44, %29, %cst_19 {dimension_numbers = #tpu.dot_dimension_numbers<[2], [1], [1], [2], [0, 0, 0, 1, 1, 2], [0], [0]>} : vector<1x8x8xbf16>, vector<1x8x8xbf16>, vector<1x8x8xf32> -> vector<1x8x8xf32>
    "tpu.trace_stop"() : () -> ()
    %cst_20 = arith.constant 1.000000e-30 : f32
    %46 = vector.broadcast %cst_20 : f32 to vector<1x8x1xf32>
    %47 = arith.addf %43, %46 : vector<1x8x1xf32>
    %48 = tpu.reciprocal %47 {approx = true} : vector<1x8x1xf32> -> vector<1x8x1xf32>
    %49 = vector.broadcast %48 : vector<1x8x1xf32> to vector<1x8x8xf32>
    %50 = arith.mulf %45, %49 : vector<1x8x8xf32>
    %51 = vector.shape_cast %50 : vector<1x8x8xf32> to vector<8x8xf32>
    %c0_21 = arith.constant 0 : index
    %c0_22 = arith.constant 0 : index
    %52 = vector.load %arg10[%c0_21, %c0_22] : memref<8x32xf32, #tpu.memory_space<vmem>>, vector<8x8xf32>
    tpu.vector_store %arg10[%c0_21, %c0_22], %51 {strides = array<i32>} : memref<8x32xf32, #tpu.memory_space<vmem>>, vector<8x8xf32>,
    %53 = vector.extract_strided_slice %21 {offsets = [0, 8], sizes = [8, 8], strides = [1, 1]} : vector<8x96xbf16> to vector<8x8xbf16>
    %54 = vector.shape_cast %53 : vector<8x8xbf16> to vector<1x8x8xbf16>
    %55 = vector.extract_strided_slice %21 {offsets = [0, 40], sizes = [8, 8], strides = [1, 1]} : vector<8x96xbf16> to vector<8x8xbf16>
    %56 = vector.shape_cast %55 : vector<8x8xbf16> to vector<1x8x8xbf16>
    %57 = vector.extract_strided_slice %21 {offsets = [0, 72], sizes = [8, 8], strides = [1, 1]} : vector<8x96xbf16> to vector<8x8xbf16>
    %58 = vector.shape_cast %57 : vector<8x8xbf16> to vector<1x8x8xbf16>
    "tpu.trace_start"() <{level = 10 : i32, message = "bqd,bkd->bqk"}> : () -> ()
    %cst_23 = arith.constant dense<0.000000e+00> : vector<1x8x8xf32>
    %59 = tpu.matmul %54, %56, %cst_23 {dimension_numbers = #tpu.dot_dimension_numbers<[2], [2], [1], [1], [0, 0, 0, 1, 1, 1], [0], [0]>} : vector<1x8x8xbf16>, vector<1x8x8xbf16>, vector<1x8x8xf32> -> vector<1x8x8xf32>
    "tpu.trace_stop"() : () -> ()
    %cst_24 = arith.constant 0.353553385 : f32
    %60 = vector.broadcast %cst_24 : f32 to vector<1x8x8xf32>
    %61 = arith.mulf %59, %60 : vector<1x8x8xf32>
    %62 = vector.broadcast %23 : vector<1x1x8xf32> to vector<1x8x8xf32>
    %63 = arith.addf %61, %62 : vector<1x8x8xf32>
    %cst_25 = arith.constant dense<0xFF800000> : vector<1x8xf32>
    %64 = vector.multi_reduction <maximumf>, %63, %cst_25 [2] : vector<1x8x8xf32> to vector<1x8xf32>
    %65 = vector.shape_cast %64 : vector<1x8xf32> to vector<1x8x1xf32>
    %66 = vector.broadcast %65 : vector<1x8x1xf32> to vector<1x8x8xf32>
    %67 = arith.subf %63, %66 : vector<1x8x8xf32>
    %68 = math.exp %67 : vector<1x8x8xf32>
    %69 = vector.broadcast %22 : vector<1x1x8xf32> to vector<1x8x8xf32>
    %70 = arith.mulf %68, %69 : vector<1x8x8xf32>
    %cst_26 = arith.constant dense<0.000000e+00> : vector<1x8xf32>
    %71 = vector.multi_reduction <add>, %70, %cst_26 [2] : vector<1x8x8xf32> to vector<1x8xf32>
    %72 = vector.shape_cast %71 : vector<1x8xf32> to vector<1x8x1xf32>
    %73 = arith.truncf %70 : vector<1x8x8xf32> to vector<1x8x8xbf16>
    "tpu.trace_start"() <{level = 10 : i32, message = "bqk,bkd->bqd"}> : () -> ()
    %cst_27 = arith.constant dense<0.000000e+00> : vector<1x8x8xf32>
    %74 = tpu.matmul %73, %58, %cst_27 {dimension_numbers = #tpu.dot_dimension_numbers<[2], [1], [1], [2], [0, 0, 0, 1, 1, 2], [0], [0]>} : vector<1x8x8xbf16>, vector<1x8x8xbf16>, vector<1x8x8xf32> -> vector<1x8x8xf32>
    "tpu.trace_stop"() : () -> ()
    %cst_28 = arith.constant 1.000000e-30 : f32
    %75 = vector.broadcast %cst_28 : f32 to vector<1x8x1xf32>
    %76 = arith.addf %72, %75 : vector<1x8x1xf32>
    %77 = tpu.reciprocal %76 {approx = true} : vector<1x8x1xf32> -> vector<1x8x1xf32>
    %78 = vector.broadcast %77 : vector<1x8x1xf32> to vector<1x8x8xf32>
    %79 = arith.mulf %74, %78 : vector<1x8x8xf32>
    %80 = vector.shape_cast %79 : vector<1x8x8xf32> to vector<8x8xf32>
    %c0_29 = arith.constant 0 : index
    %c8 = arith.constant 8 : index
    %81 = vector.load %arg10[%c0_29, %c8] : memref<8x32xf32, #tpu.memory_space<vmem>>, vector<8x8xf32>
    tpu.vector_store %arg10[%c0_29, %c8], %80 {strides = array<i32>} : memref<8x32xf32, #tpu.memory_space<vmem>>, vector<8x8xf32>,
    %82 = vector.extract_strided_slice %21 {offsets = [0, 16], sizes = [8, 8], strides = [1, 1]} : vector<8x96xbf16> to vector<8x8xbf16>
    %83 = vector.shape_cast %82 : vector<8x8xbf16> to vector<1x8x8xbf16>
    %84 = vector.extract_strided_slice %21 {offsets = [0, 48], sizes = [8, 8], strides = [1, 1]} : vector<8x96xbf16> to vector<8x8xbf16>
    %85 = vector.shape_cast %84 : vector<8x8xbf16> to vector<1x8x8xbf16>
    %86 = vector.extract_strided_slice %21 {offsets = [0, 80], sizes = [8, 8], strides = [1, 1]} : vector<8x96xbf16> to vector<8x8xbf16>
    %87 = vector.shape_cast %86 : vector<8x8xbf16> to vector<1x8x8xbf16>
    "tpu.trace_start"() <{level = 10 : i32, message = "bqd,bkd->bqk"}> : () -> ()
    %cst_30 = arith.constant dense<0.000000e+00> : vector<1x8x8xf32>
    %88 = tpu.matmul %83, %85, %cst_30 {dimension_numbers = #tpu.dot_dimension_numbers<[2], [2], [1], [1], [0, 0, 0, 1, 1, 1], [0], [0]>} : vector<1x8x8xbf16>, vector<1x8x8xbf16>, vector<1x8x8xf32> -> vector<1x8x8xf32>
    "tpu.trace_stop"() : () -> ()
    %cst_31 = arith.constant 0.353553385 : f32
    %89 = vector.broadcast %cst_31 : f32 to vector<1x8x8xf32>
    %90 = arith.mulf %88, %89 : vector<1x8x8xf32>
    %91 = vector.broadcast %23 : vector<1x1x8xf32> to vector<1x8x8xf32>
    %92 = arith.addf %90, %91 : vector<1x8x8xf32>
    %cst_32 = arith.constant dense<0xFF800000> : vector<1x8xf32>
    %93 = vector.multi_reduction <maximumf>, %92, %cst_32 [2] : vector<1x8x8xf32> to vector<1x8xf32>
    %94 = vector.shape_cast %93 : vector<1x8xf32> to vector<1x8x1xf32>
    %95 = vector.broadcast %94 : vector<1x8x1xf32> to vector<1x8x8xf32>
    %96 = arith.subf %92, %95 : vector<1x8x8xf32>
    %97 = math.exp %96 : vector<1x8x8xf32>
    %98 = vector.broadcast %22 : vector<1x1x8xf32> to vector<1x8x8xf32>
    %99 = arith.mulf %97, %98 : vector<1x8x8xf32>
    %cst_33 = arith.constant dense<0.000000e+00> : vector<1x8xf32>
    %100 = vector.multi_reduction <add>, %99, %cst_33 [2] : vector<1x8x8xf32> to vector<1x8xf32>
    %101 = vector.shape_cast %100 : vector<1x8xf32> to vector<1x8x1xf32>
    %102 = arith.truncf %99 : vector<1x8x8xf32> to vector<1x8x8xbf16>
    "tpu.trace_start"() <{level = 10 : i32, message = "bqk,bkd->bqd"}> : () -> ()
    %cst_34 = arith.constant dense<0.000000e+00> : vector<1x8x8xf32>
    %103 = tpu.matmul %102, %87, %cst_34 {dimension_numbers = #tpu.dot_dimension_numbers<[2], [1], [1], [2], [0, 0, 0, 1, 1, 2], [0], [0]>} : vector<1x8x8xbf16>, vector<1x8x8xbf16>, vector<1x8x8xf32> -> vector<1x8x8xf32>
    "tpu.trace_stop"() : () -> ()
    %cst_35 = arith.constant 1.000000e-30 : f32
    %104 = vector.broadcast %cst_35 : f32 to vector<1x8x1xf32>
    %105 = arith.addf %101, %104 : vector<1x8x1xf32>
    %106 = tpu.reciprocal %105 {approx = true} : vector<1x8x1xf32> -> vector<1x8x1xf32>
    %107 = vector.broadcast %106 : vector<1x8x1xf32> to vector<1x8x8xf32>
    %108 = arith.mulf %103, %107 : vector<1x8x8xf32>
    %109 = vector.shape_cast %108 : vector<1x8x8xf32> to vector<8x8xf32>
    %c0_36 = arith.constant 0 : index
    %c16 = arith.constant 16 : index
    %110 = vector.load %arg10[%c0_36, %c16] : memref<8x32xf32, #tpu.memory_space<vmem>>, vector<8x8xf32>
    tpu.vector_store %arg10[%c0_36, %c16], %109 {strides = array<i32>} : memref<8x32xf32, #tpu.memory_space<vmem>>, vector<8x8xf32>,
    %111 = vector.extract_strided_slice %21 {offsets = [0, 24], sizes = [8, 8], strides = [1, 1]} : vector<8x96xbf16> to vector<8x8xbf16>
    %112 = vector.shape_cast %111 : vector<8x8xbf16> to vector<1x8x8xbf16>
    %113 = vector.extract_strided_slice %21 {offsets = [0, 56], sizes = [8, 8], strides = [1, 1]} : vector<8x96xbf16> to vector<8x8xbf16>
    %114 = vector.shape_cast %113 : vector<8x8xbf16> to vector<1x8x8xbf16>
    %115 = vector.extract_strided_slice %21 {offsets = [0, 88], sizes = [8, 8], strides = [1, 1]} : vector<8x96xbf16> to vector<8x8xbf16>
    %116 = vector.shape_cast %115 : vector<8x8xbf16> to vector<1x8x8xbf16>
    "tpu.trace_start"() <{level = 10 : i32, message = "bqd,bkd->bqk"}> : () -> ()
    %cst_37 = arith.constant dense<0.000000e+00> : vector<1x8x8xf32>
    %117 = tpu.matmul %112, %114, %cst_37 {dimension_numbers = #tpu.dot_dimension_numbers<[2], [2], [1], [1], [0, 0, 0, 1, 1, 1], [0], [0]>} : vector<1x8x8xbf16>, vector<1x8x8xbf16>, vector<1x8x8xf32> -> vector<1x8x8xf32>
    "tpu.trace_stop"() : () -> ()
    %cst_38 = arith.constant 0.353553385 : f32
    %118 = vector.broadcast %cst_38 : f32 to vector<1x8x8xf32>
    %119 = arith.mulf %117, %118 : vector<1x8x8xf32>
    %120 = vector.broadcast %23 : vector<1x1x8xf32> to vector<1x8x8xf32>
    %121 = arith.addf %119, %120 : vector<1x8x8xf32>
    %cst_39 = arith.constant dense<0xFF800000> : vector<1x8xf32>
    %122 = vector.multi_reduction <maximumf>, %121, %cst_39 [2] : vector<1x8x8xf32> to vector<1x8xf32>
    %123 = vector.shape_cast %122 : vector<1x8xf32> to vector<1x8x1xf32>
    %124 = vector.broadcast %123 : vector<1x8x1xf32> to vector<1x8x8xf32>
    %125 = arith.subf %121, %124 : vector<1x8x8xf32>
    %126 = math.exp %125 : vector<1x8x8xf32>
    %127 = vector.broadcast %22 : vector<1x1x8xf32> to vector<1x8x8xf32>
    %128 = arith.mulf %126, %127 : vector<1x8x8xf32>
    %cst_40 = arith.constant dense<0.000000e+00> : vector<1x8xf32>
    %129 = vector.multi_reduction <add>, %128, %cst_40 [2] : vector<1x8x8xf32> to vector<1x8xf32>
    %130 = vector.shape_cast %129 : vector<1x8xf32> to vector<1x8x1xf32>
    %131 = arith.truncf %128 : vector<1x8x8xf32> to vector<1x8x8xbf16>
    "tpu.trace_start"() <{level = 10 : i32, message = "bqk,bkd->bqd"}> : () -> ()
    %cst_41 = arith.constant dense<0.000000e+00> : vector<1x8x8xf32>
    %132 = tpu.matmul %131, %116, %cst_41 {dimension_numbers = #tpu.dot_dimension_numbers<[2], [1], [1], [2], [0, 0, 0, 1, 1, 2], [0], [0]>} : vector<1x8x8xbf16>, vector<1x8x8xbf16>, vector<1x8x8xf32> -> vector<1x8x8xf32>
    "tpu.trace_stop"() : () -> ()
    %cst_42 = arith.constant 1.000000e-30 : f32
    %133 = vector.broadcast %cst_42 : f32 to vector<1x8x1xf32>
    %134 = arith.addf %130, %133 : vector<1x8x1xf32>
    %135 = tpu.reciprocal %134 {approx = true} : vector<1x8x1xf32> -> vector<1x8x1xf32>
    %136 = vector.broadcast %135 : vector<1x8x1xf32> to vector<1x8x8xf32>
    %137 = arith.mulf %132, %136 : vector<1x8x8xf32>
    %138 = vector.shape_cast %137 : vector<1x8x8xf32> to vector<8x8xf32>
    %c0_43 = arith.constant 0 : index
    %c24 = arith.constant 24 : index
    %139 = vector.load %arg10[%c0_43, %c24] : memref<8x32xf32, #tpu.memory_space<vmem>>, vector<8x8xf32>
    tpu.vector_store %arg10[%c0_43, %c24], %138 {strides = array<i32>} : memref<8x32xf32, #tpu.memory_space<vmem>>, vector<8x8xf32>,
    %c0_44 = arith.constant 0 : index
    %c0_45 = arith.constant 0 : index
    %140 = vector.load %arg10[%c0_44, %c0_45] : memref<8x32xf32, #tpu.memory_space<vmem>>, vector<8x32xf32>
    %141 = arith.truncf %140 : vector<8x32xf32> to vector<8x32xbf16>
    %c0_46 = arith.constant 0 : index
    %c0_47 = arith.constant 0 : index
    %c0_48 = arith.constant 0 : index
    %142 = vector.load %arg5[%c0_46, %c0_47, %c0_48] : memref<1x32x32xbf16, #tpu.memory_space<vmem>>, vector<1x32x32xbf16>
    %143 = vector.shape_cast %142 : vector<1x32x32xbf16> to vector<32x32xbf16>
    %cst_49 = arith.constant dense<0.000000e+00> : vector<8x32xf32>
    %144 = tpu.matmul %141, %143, %cst_49 {dimension_numbers = #tpu.dot_dimension_numbers<[1], [0], [0], [1], [0, 0, 1, 1], [], []>} : vector<8x32xbf16>, vector<32x32xbf16>, vector<8x32xf32> -> vector<8x32xf32>
    %145 = vector.broadcast %8 : vector<1x32xf32> to vector<8x32xf32>
    %146 = arith.addf %144, %145 : vector<8x32xf32>
    %147 = arith.addf %4, %146 : vector<8x32xf32>
    %cst_50 = arith.constant dense<0.000000e+00> : vector<8xf32>
    %148 = vector.multi_reduction <add>, %147, %cst_50 [1] : vector<8x32xf32> to vector<8xf32>
    %149 = vector.shape_cast %148 : vector<8xf32> to vector<8x1xf32>
    %cst_51 = arith.constant 3.200000e+01 : f32
    %150 = vector.broadcast %cst_51 : f32 to vector<8x1xf32>
    %151 = arith.divf %149, %150 : vector<8x1xf32>
    %152 = vector.broadcast %151 : vector<8x1xf32> to vector<8x32xf32>
    %153 = arith.subf %147, %152 : vector<8x32xf32>
    %154 = arith.mulf %153, %153 : vector<8x32xf32>
    %cst_52 = arith.constant dense<0.000000e+00> : vector<8xf32>
    %155 = vector.multi_reduction <add>, %154, %cst_52 [1] : vector<8x32xf32> to vector<8xf32>
    %156 = vector.shape_cast %155 : vector<8xf32> to vector<8x1xf32>
    %cst_53 = arith.constant 3.200000e+01 : f32
    %157 = vector.broadcast %cst_53 : f32 to vector<8x1xf32>
    %158 = arith.divf %156, %157 : vector<8x1xf32>
    %159 = vector.broadcast %151 : vector<8x1xf32> to vector<8x32xf32>
    %160 = arith.subf %147, %159 : vector<8x32xf32>
    %cst_54 = arith.constant 9.99999974E-6 : f32
    %161 = vector.broadcast %cst_54 : f32 to vector<8x1xf32>
    %162 = arith.addf %158, %161 : vector<8x1xf32>
    %163 = math.rsqrt %162 : vector<8x1xf32>
    %164 = vector.broadcast %163 : vector<8x1xf32> to vector<8x32xf32>
    %165 = arith.mulf %160, %164 : vector<8x32xf32>
    %166 = vector.broadcast %9 : vector<1x32xf32> to vector<8x32xf32>
    %167 = arith.mulf %165, %166 : vector<8x32xf32>
    %168 = vector.broadcast %10 : vector<1x32xf32> to vector<8x32xf32>
    %169 = arith.addf %167, %168 : vector<8x32xf32>
    %170 = arith.truncf %169 : vector<8x32xf32> to vector<8x32xbf16>
    %c0_55 = arith.constant 0 : index
    %c0_56 = arith.constant 0 : index
    %c0_57 = arith.constant 0 : index
    %171 = vector.load %arg6[%c0_55, %c0_56, %c0_57] : memref<1x32x64xbf16, #tpu.memory_space<vmem>>, vector<1x32x64xbf16>
    %172 = vector.shape_cast %171 : vector<1x32x64xbf16> to vector<32x64xbf16>
    %cst_58 = arith.constant dense<0.000000e+00> : vector<8x64xf32>
    %173 = tpu.matmul %170, %172, %cst_58 {dimension_numbers = #tpu.dot_dimension_numbers<[1], [0], [0], [1], [0, 0, 1, 1], [], []>} : vector<8x32xbf16>, vector<32x64xbf16>, vector<8x64xf32> -> vector<8x64xf32>
    %174 = vector.broadcast %11 : vector<1x64xf32> to vector<8x64xf32>
    %175 = arith.addf %173, %174 : vector<8x64xf32>
    %cst_59 = arith.constant 0.000000e+00 : f32
    %176 = vector.broadcast %cst_59 : f32 to vector<8x64xf32>
    %177 = arith.maximumf %175, %176 : vector<8x64xf32>
    %178 = arith.truncf %177 : vector<8x64xf32> to vector<8x64xbf16>
    %c0_60 = arith.constant 0 : index
    %c0_61 = arith.constant 0 : index
    %c0_62 = arith.constant 0 : index
    %179 = vector.load %arg7[%c0_60, %c0_61, %c0_62] : memref<1x64x32xbf16, #tpu.memory_space<vmem>>, vector<1x64x32xbf16>
    %180 = vector.shape_cast %179 : vector<1x64x32xbf16> to vector<64x32xbf16>
    %cst_63 = arith.constant dense<0.000000e+00> : vector<8x32xf32>
    %181 = tpu.matmul %178, %180, %cst_63 {dimension_numbers = #tpu.dot_dimension_numbers<[1], [0], [0], [1], [0, 0, 1, 1], [], []>} : vector<8x64xbf16>, vector<64x32xbf16>, vector<8x32xf32> -> vector<8x32xf32>
    %182 = vector.broadcast %12 : vector<1x32xf32> to vector<8x32xf32>
    %183 = arith.addf %181, %182 : vector<8x32xf32>
    %184 = arith.addf %169, %183 : vector<8x32xf32>
    %cst_64 = arith.constant dense<0.000000e+00> : vector<8xf32>
    %185 = vector.multi_reduction <add>, %184, %cst_64 [1] : vector<8x32xf32> to vector<8xf32>
    %186 = vector.shape_cast %185 : vector<8xf32> to vector<8x1xf32>
    %cst_65 = arith.constant 3.200000e+01 : f32
    %187 = vector.broadcast %cst_65 : f32 to vector<8x1xf32>
    %188 = arith.divf %186, %187 : vector<8x1xf32>
    %189 = vector.broadcast %188 : vector<8x1xf32> to vector<8x32xf32>
    %190 = arith.subf %184, %189 : vector<8x32xf32>
    %191 = arith.mulf %190, %190 : vector<8x32xf32>
    %cst_66 = arith.constant dense<0.000000e+00> : vector<8xf32>
    %192 = vector.multi_reduction <add>, %191, %cst_66 [1] : vector<8x32xf32> to vector<8xf32>
    %193 = vector.shape_cast %192 : vector<8xf32> to vector<8x1xf32>
    %cst_67 = arith.constant 3.200000e+01 : f32
    %194 = vector.broadcast %cst_67 : f32 to vector<8x1xf32>
    %195 = arith.divf %193, %194 : vector<8x1xf32>
    %196 = vector.broadcast %188 : vector<8x1xf32> to vector<8x32xf32>
    %197 = arith.subf %184, %196 : vector<8x32xf32>
    %cst_68 = arith.constant 9.99999974E-6 : f32
    %198 = vector.broadcast %cst_68 : f32 to vector<8x1xf32>
    %199 = arith.addf %195, %198 : vector<8x1xf32>
    %200 = math.rsqrt %199 : vector<8x1xf32>
    %201 = vector.broadcast %200 : vector<8x1xf32> to vector<8x32xf32>
    %202 = arith.mulf %197, %201 : vector<8x32xf32>
    %203 = vector.broadcast %13 : vector<1x32xf32> to vector<8x32xf32>
    %204 = arith.mulf %202, %203 : vector<8x32xf32>
    %205 = vector.broadcast %14 : vector<1x32xf32> to vector<8x32xf32>
    %206 = arith.addf %204, %205 : vector<8x32xf32>
    %207 = vector.shape_cast %206 : vector<8x32xf32> to vector<1x8x32xf32>
    %c0_69 = arith.constant 0 : index
    %c0_70 = arith.constant 0 : index
    %c0_71 = arith.constant 0 : index
    %208 = vector.load %arg9[%c0_69, %c0_70, %c0_71] : memref<1x8x32xf32, #tpu.memory_space<vmem>>, vector<1x8x32xf32>
    tpu.vector_store %arg9[%c0_69, %c0_70, %c0_71], %207 {strides = array<i32>} : memref<1x8x32xf32, #tpu.memory_space<vmem>>, vector<1x8x32xf32>,
    return
  }
  func.func @transform_0(%arg0: i32, %arg1: i32) -> (i32, i32, i32) {
    %c0_i32 = arith.constant 0 : i32
    %c0_i32_0 = arith.constant 0 : i32
    %c0_i32_1 = arith.constant 0 : i32
    return %arg0, %c0_i32, %c0_i32_0 : i32, i32, i32
  }
  func.func @transform_1(%arg0: i32, %arg1: i32) -> (i32, i32, i32) {
    %c0_i32 = arith.constant 0 : i32
    %c0_i32_0 = arith.constant 0 : i32
    %c0_i32_1 = arith.constant 0 : i32
    return %arg0, %c0_i32, %c0_i32_0 : i32, i32, i32
  }
  func.func @transform_2(%arg0: i32, %arg1: i32) -> (i32, i32, i32) {
    %c0_i32 = arith.constant 0 : i32
    %c0_i32_0 = arith.constant 0 : i32
    %c0_i32_1 = arith.constant 0 : i32
    return %arg1, %c0_i32, %c0_i32_0 : i32, i32, i32
  }
  func.func @transform_3(%arg0: i32, %arg1: i32) -> (i32, i32, i32) {
    %c0_i32 = arith.constant 0 : i32
    %c0_i32_0 = arith.constant 0 : i32
    %c0_i32_1 = arith.constant 0 : i32
    return %arg1, %c0_i32, %c0_i32_0 : i32, i32, i32
  }
  func.func @transform_4(%arg0: i32, %arg1: i32) -> (i32, i32, i32) {
    %c0_i32 = arith.constant 0 : i32
    %c0_i32_0 = arith.constant 0 : i32
    %c0_i32_1 = arith.constant 0 : i32
    return %arg1, %c0_i32, %c0_i32_0 : i32, i32, i32
  }
  func.func @transform_5(%arg0: i32, %arg1: i32) -> (i32, i32, i32) {
    %c0_i32 = arith.constant 0 : i32
    %c0_i32_0 = arith.constant 0 : i32
    %c0_i32_1 = arith.constant 0 : i32
    return %arg1, %c0_i32, %c0_i32_0 : i32, i32, i32
  }
  func.func @transform_6(%arg0: i32, %arg1: i32) -> (i32, i32, i32) {
    %c0_i32 = arith.constant 0 : i32
    %c0_i32_0 = arith.constant 0 : i32
    %c0_i32_1 = arith.constant 0 : i32
    return %arg1, %c0_i32, %c0_i32_0 : i32, i32, i32
  }
  func.func @transform_7(%arg0: i32, %arg1: i32) -> (i32, i32, i32) {
    %c0_i32 = arith.constant 0 : i32
    %c0_i32_0 = arith.constant 0 : i32
    %c0_i32_1 = arith.constant 0 : i32
    return %arg0, %c0_i32, %c0_i32_0 : i32, i32, i32
  }
}

</mosaic_0001>

<llo_original>
// kernel: tpu_custom_call.1
$region0: #{tpu_custom_call.1}
  #allocation0 [shape = 'u32[]', space=smem, size = 0x4, offset = 0x4, fixed_abs, tag = 'smem constant byte address 0x4 - core index']
  #allocation1 [shape = 'u32[144,128]{1,0:T(1,128)}', space=vmem, size = 0x12000, scoped, tag = 'internal scratch']
  #allocation2 [shape = 'f32[8,32]{1,0:T(8,128)}', space=vmem, size = 0x1000, scoped, tag = 'scratch operand']
  #allocation3 [shape = 'f32[1,1,8]{2,1,0:T(1,128)}', space=vmem, size = 0x200, scoped, tag = 'scratch operand']
  #allocation4 [shape = 'f32[1,1,8]{2,1,0:T(1,128)}', space=vmem, size = 0x200, scoped, tag = 'scratch operand']
  %s0 = inlined_call_operand.hbm [shape: s32[2,1,1], index: 0, kind: input, shape index: {}]
  %s1 = inlined_call_operand.hbm [shape: f32[2,8,32], index: 1, kind: input, shape index: {}]
  %s2 = inlined_call_operand.hbm [shape: bf16[2,32,96], index: 2, kind: input, shape index: {}]
  %s3 = inlined_call_operand.hbm [shape: bf16[2,32,32], index: 3, kind: input, shape index: {}]
  %s4 = inlined_call_operand.hbm [shape: bf16[2,32,64], index: 4, kind: input, shape index: {}]
  %s5 = inlined_call_operand.hbm [shape: bf16[2,64,32], index: 5, kind: input, shape index: {}]
  %s6 = inlined_call_operand.hbm [shape: f32[2,8,96], index: 6, kind: input, shape index: {}]
  %s7 = inlined_call_operand.hbm [shape: f32[2,8,32], index: 7, kind: output, shape index: {}]
  %s8 = sld [smem:[#allocation0]]
  $region93: #{tpu_custom_call.1} parent=0
    _
  %s10 = ssub.s32 1, %s8
  %s11 = scalar_select 0, %s10, %s8
  $region1: #{tpu_custom_call.1} parent=0
    #allocation5 [shape = 'u8[1024]{0}', space=vmem, size = 0x400, scoped, tag = 'input window, operand 0']
    #allocation6 [shape = 's32[2]{0}', space=sflag, size = 0x8, scoped, tag = 'scoped memory for tpu_custom_call.1']
    #allocation7 [shape = 's32[2]{0}', space=sflag, size = 0x8, scoped, tag = 'scoped memory for tpu_custom_call.1']
    #allocation8 [shape = 'u8[8192]{0}', space=vmem, size = 0x2000, scoped, tag = 'input window, operand 1']
    #allocation9 [shape = 's32[2]{0}', space=sflag, size = 0x8, scoped, tag = 'scoped memory for tpu_custom_call.1']
    #allocation10 [shape = 'u8[16384]{0}', space=vmem, size = 0x4000, scoped, tag = 'input window, operand 2']
    #allocation11 [shape = 'u8[16384]{0}', space=vmem, size = 0x4000, scoped, tag = 'input window, operand 3']
    #allocation12 [shape = 's32[2]{0}', space=sflag, size = 0x8, scoped, tag = 'scoped memory for tpu_custom_call.1']
    #allocation13 [shape = 'u8[16384]{0}', space=vmem, size = 0x4000, scoped, tag = 'input window, operand 4']
    #allocation14 [shape = 'u8[32768]{0}', space=vmem, size = 0x8000, scoped, tag = 'input window, operand 5']
    #allocation15 [shape = 's32[2]{0}', space=sflag, size = 0x8, scoped, tag = 'scoped memory for tpu_custom_call.1']
    #allocation16 [shape = 'u8[8192]{0}', space=vmem, size = 0x2000, scoped, tag = 'input window, operand 6']
    #allocation17 [shape = 'u8[8192]{0}', space=vmem, size = 0x2000, scoped, tag = 'output window, operand 0']
    %12 = vsyncpa [#allocation6], 0
    %s13 = scalar_lea.sflag [#allocation6], 1
    %14 = vsyncpa %s13, 0
    %15 = vsyncpa [#allocation9], 0
    %s16 = scalar_lea.sflag [#allocation9], 1
    %17 = vsyncpa %s16, 0
    %18 = vsyncpa [#allocation12], 0
    %s19 = scalar_lea.sflag [#allocation12], 1
    %20 = vsyncpa %s19, 0
    %21 = vsyncpa [#allocation15], 0
    %s22 = scalar_lea.sflag [#allocation15], 1
    %23 = vsyncpa %s22, 0
    %24 = vsyncpa [#allocation7], 0
    %s25 = scalar_lea.sflag [#allocation7], 1
    %26 = vsyncpa %s25, 0
    loop: start=0, step=1, limit=6
    $region2: #{tpu_custom_call.1} parent=1 // loop_pre_header
      _
    $region3: #{tpu_custom_call.1} parent=1 // loop_header
      %s28 = sphi 0, %s32
      %p29 = scmp.ge.s32.totalorder %s28, 6
      %s35 = sphi 0, %s47
      %s36 = sphi 0, %s43
      %s37 = sphi 0, %s35
      %s38 = sphi 0, %s36
      %s39 = sphi 0, %s37
      %s40 = sphi 0, %s38
      %s50 = sphi 0, %s52
      %s53 = sphi 0, %s50
      %s54 = sphi 0, %s53
      %s70 = sphi 0, %s54
      %s76 = sphi 0, %s78
      %s79 = sphi 0, %s76
      %s80 = sphi 0, %s79
      %s96 = sphi 0, %s80
      %s102 = sphi 0, %s104
      %s105 = sphi 0, %s102
      %s106 = sphi 0, %s105
      %s122 = sphi 0, %s106
      %s128 = sphi 0, %s130
      %s131 = sphi 0, %s128
      %s132 = sphi 0, %s131
      %s148 = sphi 0, %s132
      %s154 = sphi 0, %s156
      %s157 = sphi 0, %s154
      %s158 = sphi 0, %s157
      %s174 = sphi 0, %s158
      %s180 = sphi 0, %s182
      %s183 = sphi 0, %s180
      %s184 = sphi 0, %s183
      %s200 = sphi 0, %s184
      %s206 = sphi 0, %s208
      %s209 = sphi 0, %s206
      %s210 = sphi 0, %s209
      %s226 = sphi 0, %s210
      %s232 = sphi 0, %s234
      %s235 = sphi 0, %s232
      %s236 = sphi 0, %s235
      %s252 = sphi 0, %s236
    $region4: #{tpu_custom_call.1} parent=1 // loop_header_branch
      %31 = sbr.rel (%p29) target = $region8
    $region5: #{tpu_custom_call.1} parent=1 // loop_body
      %s33 = ssub.s32 %s28, 1
      %s34 = ssub.s32 %s28, 2
      %s41 = sadd.s32 1, %s36
      %p42 = scmp.ge.s32.totalorder %s41, 2
      %s43 = scalar_select %p42, 0, %s41
      %s44 = sadd.s32 1, %s35
      %s45 = scalar_select %p42, %s44, %s35
      %p46 = scmp.ge.s32.totalorder %s45, 2
      %s47 = scalar_select %p46, 0, %s45
      %s48 = ssub.s32 %s35, %s47
      %p49 = scmp.eq.s32.totalorder %s48, 0
      %s51 = sadd.s32 %s50, 1
      %s52 = scalar_select %p49, %s50, %s51
      %p55 = pneg %p49
      %p56 = scmp.eq.s32.totalorder %s28, 3
      %p57 = por %p55, %p56
      %p58 = scmp.ne.s32.totalorder %s50, %s53
      %p59 = scmp.eq.s32.totalorder %s28, 0
      %p60 = por %p58, %p59
      %p61 = scmp.ne.s32.totalorder %s50, %s53
      %p62 = scmp.eq.s32.totalorder %s33, 3
      %p63 = por %p61, %p62
      %p64 = scmp.ne.s32.totalorder %s53, %s54
      %p65 = scmp.eq.s32.totalorder %s33, 0
      %p66 = por %p64, %p65
      %p67 = scmp.ne.s32.totalorder %s53, %s54
      %p68 = scmp.eq.s32.totalorder %s34, 3
      %p69 = por %p67, %p68
      %p71 = scmp.ne.s32.totalorder %s54, %s70
      %p72 = scmp.eq.s32.totalorder %s34, 0
      %p73 = por %p71, %p72
      %s74 = ssub.s32 %s35, %s47
      %p75 = scmp.eq.s32.totalorder %s74, 0
      %s77 = sadd.s32 %s76, 1
      %s78 = scalar_select %p75, %s76, %s77
      %p81 = pneg %p75
      %p82 = scmp.eq.s32.totalorder %s28, 3
      %p83 = por %p81, %p82
      %p84 = scmp.ne.s32.totalorder %s76, %s79
      %p85 = scmp.eq.s32.totalorder %s28, 0
      %p86 = por %p84, %p85
      %p87 = scmp.ne.s32.totalorder %s76, %s79
      %p88 = scmp.eq.s32.totalorder %s33, 3
      %p89 = por %p87, %p88
      %p90 = scmp.ne.s32.totalorder %s79, %s80
      %p91 = scmp.eq.s32.totalorder %s33, 0
      %p92 = por %p90, %p91
      %p93 = scmp.ne.s32.totalorder %s79, %s80
      %p94 = scmp.eq.s32.totalorder %s34, 3
      %p95 = por %p93, %p94
      %p97 = scmp.ne.s32.totalorder %s80, %s96
      %p98 = scmp.eq.s32.totalorder %s34, 0
      %p99 = por %p97, %p98
      %s100 = ssub.s32 %s36, %s43
      %p101 = scmp.eq.s32.totalorder %s100, 0
      %s103 = sadd.s32 %s102, 1
      %s104 = scalar_select %p101, %s102, %s103
      %p107 = pneg %p101
      %p108 = scmp.eq.s32.totalorder %s28, 3
      %p109 = por %p107, %p108
      %p110 = scmp.ne.s32.totalorder %s102, %s105
      %p111 = scmp.eq.s32.totalorder %s28, 0
      %p112 = por %p110, %p111
      %p113 = scmp.ne.s32.totalorder %s102, %s105
      %p114 = scmp.eq.s32.totalorder %s33, 3
      %p115 = por %p113, %p114
      %p116 = scmp.ne.s32.totalorder %s105, %s106
      %p117 = scmp.eq.s32.totalorder %s33, 0
      %p118 = por %p116, %p117
      %p119 = scmp.ne.s32.totalorder %s105, %s106
      %p120 = scmp.eq.s32.totalorder %s34, 3
      %p121 = por %p119, %p120
      %p123 = scmp.ne.s32.totalorder %s106, %s122
      %p124 = scmp.eq.s32.totalorder %s34, 0
      %p125 = por %p123, %p124
      %s126 = ssub.s32 %s36, %s43
      %p127 = scmp.eq.s32.totalorder %s126, 0
      %s129 = sadd.s32 %s128, 1
      %s130 = scalar_select %p127, %s128, %s129
      %p133 = pneg %p127
      %p134 = scmp.eq.s32.totalorder %s28, 3
      %p135 = por %p133, %p134
      %p136 = scmp.ne.s32.totalorder %s128, %s131
      %p137 = scmp.eq.s32.totalorder %s28, 0
      %p138 = por %p136, %p137
      %p139 = scmp.ne.s32.totalorder %s128, %s131
      %p140 = scmp.eq.s32.totalorder %s33, 3
      %p141 = por %p139, %p140
      %p142 = scmp.ne.s32.totalorder %s131, %s132
      %p143 = scmp.eq.s32.totalorder %s33, 0
      %p144 = por %p142, %p143
      %p145 = scmp.ne.s32.totalorder %s131, %s132
      %p146 = scmp.eq.s32.totalorder %s34, 3
      %p147 = por %p145, %p146
      %p149 = scmp.ne.s32.totalorder %s132, %s148
      %p150 = scmp.eq.s32.totalorder %s34, 0
      %p151 = por %p149, %p150
      %s152 = ssub.s32 %s36, %s43
      %p153 = scmp.eq.s32.totalorder %s152, 0
      %s155 = sadd.s32 %s154, 1
      %s156 = scalar_select %p153, %s154, %s155
      %p159 = pneg %p153
      %p160 = scmp.eq.s32.totalorder %s28, 3
      %p161 = por %p159, %p160
      %p162 = scmp.ne.s32.totalorder %s154, %s157
      %p163 = scmp.eq.s32.totalorder %s28, 0
      %p164 = por %p162, %p163
      %p165 = scmp.ne.s32.totalorder %s154, %s157
      %p166 = scmp.eq.s32.totalorder %s33, 3
      %p167 = por %p165, %p166
      %p168 = scmp.ne.s32.totalorder %s157, %s158
      %p169 = scmp.eq.s32.totalorder %s33, 0
      %p170 = por %p168, %p169
      %p171 = scmp.ne.s32.totalorder %s157, %s158
      %p172 = scmp.eq.s32.totalorder %s34, 3
      %p173 = por %p171, %p172
      %p175 = scmp.ne.s32.totalorder %s158, %s174
      %p176 = scmp.eq.s32.totalorder %s34, 0
      %p177 = por %p175, %p176
      %s178 = ssub.s32 %s36, %s43
      %p179 = scmp.eq.s32.totalorder %s178, 0
      %s181 = sadd.s32 %s180, 1
      %s182 = scalar_select %p179, %s180, %s181
      %p185 = pneg %p179
      %p186 = scmp.eq.s32.totalorder %s28, 3
      %p187 = por %p185, %p186
      %p188 = scmp.ne.s32.totalorder %s180, %s183
      %p189 = scmp.eq.s32.totalorder %s28, 0
      %p190 = por %p188, %p189
      %p191 = scmp.ne.s32.totalorder %s180, %s183
      %p192 = scmp.eq.s32.totalorder %s33, 3
      %p193 = por %p191, %p192
      %p194 = scmp.ne.s32.totalorder %s183, %s184
      %p195 = scmp.eq.s32.totalorder %s33, 0
      %p196 = por %p194, %p195
      %p197 = scmp.ne.s32.totalorder %s183, %s184
      %p198 = scmp.eq.s32.totalorder %s34, 3
      %p199 = por %p197, %p198
      %p201 = scmp.ne.s32.totalorder %s184, %s200
      %p202 = scmp.eq.s32.totalorder %s34, 0
      %p203 = por %p201, %p202
      %s204 = ssub.s32 %s36, %s43
      %p205 = scmp.eq.s32.totalorder %s204, 0
      %s207 = sadd.s32 %s206, 1
      %s208 = scalar_select %p205, %s206, %s207
      %p211 = pneg %p205
      %p212 = scmp.eq.s32.totalorder %s28, 3
      %p213 = por %p211, %p212
      %p214 = scmp.ne.s32.totalorder %s206, %s209
      %p215 = scmp.eq.s32.totalorder %s28, 0
      %p216 = por %p214, %p215
      %p217 = scmp.ne.s32.totalorder %s206, %s209
      %p218 = scmp.eq.s32.totalorder %s33, 3
      %p219 = por %p217, %p218
      %p220 = scmp.ne.s32.totalorder %s209, %s210
      %p221 = scmp.eq.s32.totalorder %s33, 0
      %p222 = por %p220, %p221
      %p223 = scmp.ne.s32.totalorder %s209, %s210
      %p224 = scmp.eq.s32.totalorder %s34, 3
      %p225 = por %p223, %p224
      %p227 = scmp.ne.s32.totalorder %s210, %s226
      %p228 = scmp.eq.s32.totalorder %s34, 0
      %p229 = por %p227, %p228
      %s230 = ssub.s32 %s35, %s47
      %p231 = scmp.eq.s32.totalorder %s230, 0
      %s233 = sadd.s32 %s232, 1
      %s234 = scalar_select %p231, %s232, %s233
      %p237 = pneg %p231
      %p238 = scmp.eq.s32.totalorder %s28, 3
      %p239 = por %p237, %p238
      %p240 = scmp.ne.s32.totalorder %s232, %s235
      %p241 = scmp.eq.s32.totalorder %s28, 0
      %p242 = por %p240, %p241
      %p243 = scmp.ne.s32.totalorder %s232, %s235
      %p244 = scmp.eq.s32.totalorder %s33, 3
      %p245 = por %p243, %p244
      %p246 = scmp.ne.s32.totalorder %s235, %s236
      %p247 = scmp.eq.s32.totalorder %s33, 0
      %p248 = por %p246, %p247
      %p249 = scmp.ne.s32.totalorder %s235, %s236
      %p250 = scmp.eq.s32.totalorder %s34, 3
      %p251 = por %p249, %p250
      %p253 = scmp.ne.s32.totalorder %s236, %s252
      %p254 = scmp.eq.s32.totalorder %s34, 0
      %p255 = por %p253, %p254
      %p256 = scmp.le.s32.totalorder 1, %s28
      %p257 = scmp.lt.s32.totalorder %s28, 5
      %p258 = pnand %p256, %p257
      %p259 = pneg %p258
      // Predicated region
      $region9: #{tpu_custom_call.1} parent=5 // pred_check
        _
      $region10: #{tpu_custom_call.1} parent=5 // pred_check_branch
        %261 = sbr.rel (%p258) target = $region12
      $region11: #{tpu_custom_call.1} parent=5 // pred_region
        %s262 = ssub.s32 %s28, 1
      $region12: #{tpu_custom_call.1} parent=5 // pred_fallthru
        _
      %p263 = scmp.lt.s32.totalorder %s28, 4
      // Predicated region
      $region13: #{tpu_custom_call.1} parent=5 // pred_check
        %p264 = pneg %p263
      $region14: #{tpu_custom_call.1} parent=5 // pred_check_branch
        %266 = sbr.rel (%p264) target = $region16
      $region15: #{tpu_custom_call.1} parent=5 // pred_region
        // Predicated region
        $region17: #{tpu_custom_call.1} parent=15 // pred_check
          %p267 = pneg %p60
        $region18: #{tpu_custom_call.1} parent=15 // pred_check_branch
          %269 = sbr.rel (%p267) target = $region20
        $region19: #{tpu_custom_call.1} parent=15 // pred_region
          %s270 = sand.u32 %s50, 1
          %s271 = scalar_lea.sflag [#allocation6], %s270
          %s272 = sand.u32 %s50, 1
          %s273 = scalar_lea.vmem [#allocation5], %s272
          %s275 = ssub.s32 16, 16
          %276 = vsyncadd %s271, %s275
          %s277 = smul.addr %s35, 16
          %s278 = scalar_lea.hbm %s0, %s277
          %s280 = sshll.u32 %s273, 4
          %s281 = int_to_ptr.vmem [resolvable:$true] %s280
          %283 = dma.hbm_to_vmem [thread:$0]  %s278, 16, %s281, %s271
        $region20: #{tpu_custom_call.1} parent=15 // pred_fallthru
          _
        // Predicated region
        $region21: #{tpu_custom_call.1} parent=15 // pred_check
          %p284 = pneg %p86
        $region22: #{tpu_custom_call.1} parent=15 // pred_check_branch
          %286 = sbr.rel (%p284) target = $region24
        $region23: #{tpu_custom_call.1} parent=15 // pred_region
          %s287 = sand.u32 %s28, 1
          %s288 = scalar_lea.sflag [#allocation9], %s287
          %s289 = sand.u32 %s76, 1
          %s290 = smul.addr %s289, 8
          %s291 = scalar_lea.vmem [#allocation8], %s290
          %s293 = ssub.s32 128, 128
          %294 = vsyncadd %s288, %s293
          %s295 = smul.addr %s35, 128
          %s296 = scalar_lea.hbm %s1, %s295
          %s298 = sshll.u32 %s291, 4
          %s299 = int_to_ptr.vmem [resolvable:$true] %s298
          %301 = dma.hbm_to_vmem [thread:$0]  %s296, 128, %s299, %s288
        $region24: #{tpu_custom_call.1} parent=15 // pred_fallthru
          _
        // Predicated region
        $region25: #{tpu_custom_call.1} parent=15 // pred_check
          %p302 = pneg %p112
        $region26: #{tpu_custom_call.1} parent=15 // pred_check_branch
          %304 = sbr.rel (%p302) target = $region28
        $region27: #{tpu_custom_call.1} parent=15 // pred_region
          %s305 = sand.u32 %s28, 1
          %s306 = scalar_lea.sflag [#allocation9], %s305
          %s307 = sand.u32 %s102, 1
          %s308 = smul.addr %s307, 16
          %s309 = scalar_lea.vmem [#allocation10], %s308
          %s311 = ssub.s32 256, 256
          %312 = vsyncadd %s306, %s311
          %s313 = smul.addr %s36, 4
          %s314 = smul.addr %s313, 64
          %s315 = scalar_lea.hbm %s2, %s314
          %s316 = sshll.u32 %s309, 4
          %s317 = int_to_ptr.vmem [resolvable:$true] %s316
          %322 = dma.hbm_to_vmem [thread:$0]  %s315, 256, %s317, %s306, 64, 64, 4
        $region28: #{tpu_custom_call.1} parent=15 // pred_fallthru
          _
        // Predicated region
        $region29: #{tpu_custom_call.1} parent=15 // pred_check
          %p323 = pneg %p138
        $region30: #{tpu_custom_call.1} parent=15 // pred_check_branch
          %325 = sbr.rel (%p323) target = $region32
        $region31: #{tpu_custom_call.1} parent=15 // pred_region
          %s326 = sand.u32 %s28, 1
          %s327 = scalar_lea.sflag [#allocation12], %s326
          %s328 = sand.u32 %s128, 1
          %s329 = smul.addr %s328, 16
          %s330 = scalar_lea.vmem [#allocation11], %s329
          %s332 = ssub.s32 256, 256
          %333 = vsyncadd %s327, %s332
          %s334 = smul.addr %s36, 4
          %s335 = smul.addr %s334, 64
          %s336 = scalar_lea.hbm %s3, %s335
          %s337 = sshll.u32 %s330, 4
          %s338 = int_to_ptr.vmem [resolvable:$true] %s337
          %343 = dma.hbm_to_vmem [thread:$0]  %s336, 256, %s338, %s327, 64, 64, 4
        $region32: #{tpu_custom_call.1} parent=15 // pred_fallthru
          _
        // Predicated region
        $region33: #{tpu_custom_call.1} parent=15 // pred_check
          %p344 = pneg %p164
        $region34: #{tpu_custom_call.1} parent=15 // pred_check_branch
          %346 = sbr.rel (%p344) target = $region36
        $region35: #{tpu_custom_call.1} parent=15 // pred_region
          %s347 = sand.u32 %s28, 1
          %s348 = scalar_lea.sflag [#allocation12], %s347
          %s349 = sand.u32 %s154, 1
          %s350 = smul.addr %s349, 16
          %s351 = scalar_lea.vmem [#allocation13], %s350
          %s353 = ssub.s32 256, 256
          %354 = vsyncadd %s348, %s353
          %s355 = smul.addr %s36, 4
          %s356 = smul.addr %s355, 64
          %s357 = scalar_lea.hbm %s4, %s356
          %s358 = sshll.u32 %s351, 4
          %s359 = int_to_ptr.vmem [resolvable:$true] %s358
          %364 = dma.hbm_to_vmem [thread:$0]  %s357, 256, %s359, %s348, 64, 64, 4
        $region36: #{tpu_custom_call.1} parent=15 // pred_fallthru
          _
        // Predicated region
        $region37: #{tpu_custom_call.1} parent=15 // pred_check
          %p365 = pneg %p190
        $region38: #{tpu_custom_call.1} parent=15 // pred_check_branch
          %367 = sbr.rel (%p365) target = $region40
        $region39: #{tpu_custom_call.1} parent=15 // pred_region
          %s368 = sand.u32 %s28, 1
          %s369 = scalar_lea.sflag [#allocation15], %s368
          %s370 = sand.u32 %s180, 1
          %s371 = smul.addr %s370, 32
          %s372 = scalar_lea.vmem [#allocation14], %s371
          %s374 = ssub.s32 512, 512
          %375 = vsyncadd %s369, %s374
          %s376 = smul.addr %s36, 8
          %s377 = smul.addr %s376, 64
          %s378 = scalar_lea.hbm %s5, %s377
          %s379 = sshll.u32 %s372, 4
          %s380 = int_to_ptr.vmem [resolvable:$true] %s379
          %385 = dma.hbm_to_vmem [thread:$0]  %s378, 512, %s380, %s369, 64, 64, 4
        $region40: #{tpu_custom_call.1} parent=15 // pred_fallthru
          _
        // Predicated region
        $region41: #{tpu_custom_call.1} parent=15 // pred_check
          %p386 = pneg %p216
        $region42: #{tpu_custom_call.1} parent=15 // pred_check_branch
          %388 = sbr.rel (%p386) target = $region44
        $region43: #{tpu_custom_call.1} parent=15 // pred_region
          %s389 = sand.u32 %s28, 1
          %s390 = scalar_lea.sflag [#allocation15], %s389
          %s391 = sand.u32 %s206, 1
          %s392 = smul.addr %s391, 8
          %s393 = scalar_lea.vmem [#allocation16], %s392
          %s395 = ssub.s32 128, 128
          %396 = vsyncadd %s390, %s395
          %s397 = smul.addr %s36, 128
          %s398 = scalar_lea.hbm %s6, %s397
          %s400 = sshll.u32 %s393, 4
          %s401 = int_to_ptr.vmem [resolvable:$true] %s400
          %403 = dma.hbm_to_vmem [thread:$0]  %s398, 128, %s401, %s390
        $region44: #{tpu_custom_call.1} parent=15 // pred_fallthru
          _
      $region16: #{tpu_custom_call.1} parent=5 // pred_fallthru
        _
      %p404 = scmp.le.s32.totalorder 1, %s28
      %p405 = scmp.lt.s32.totalorder %s28, 5
      %p406 = pnand %p404, %p405
      %p407 = pneg %p406
      // Predicated region
      $region45: #{tpu_custom_call.1} parent=5 // pred_check
        _
      $region46: #{tpu_custom_call.1} parent=5 // pred_check_branch
        %409 = sbr.rel (%p406) target = $region48
      $region47: #{tpu_custom_call.1} parent=5 // pred_region
        %s410 = ssub.s32 %s28, 1
        %s411 = sand.u32 %s53, 1
        %s412 = scalar_lea.sflag [#allocation6], %s411
        %s413 = sand.u32 %s53, 1
        %s414 = scalar_lea.vmem [#allocation5], %s413
        // Predicated region
        $region49: #{tpu_custom_call.1} parent=47 // pred_check
          %p415 = pneg %p66
        $region50: #{tpu_custom_call.1} parent=47 // pred_check_branch
          %417 = sbr.rel (%p415) target = $region52
        $region51: #{tpu_custom_call.1} parent=47 // pred_region
          %418 = dma.done %s412, 16
        $region52: #{tpu_custom_call.1} parent=47 // pred_fallthru
          _
        %s419 = sand.u32 %s33, 1
        %s420 = scalar_lea.sflag [#allocation9], %s419
        %s421 = sand.u32 %s79, 1
        %s422 = smul.addr %s421, 8
        %s423 = scalar_lea.vmem [#allocation8], %s422
        // Predicated region
        $region53: #{tpu_custom_call.1} parent=47 // pred_check
          %p424 = pneg %p92
        $region54: #{tpu_custom_call.1} parent=47 // pred_check_branch
          %426 = sbr.rel (%p424) target = $region56
        $region55: #{tpu_custom_call.1} parent=47 // pred_region
          %427 = dma.done %s420, 128
        $region56: #{tpu_custom_call.1} parent=47 // pred_fallthru
          _
        %s428 = sand.u32 %s33, 1
        %s429 = scalar_lea.sflag [#allocation9], %s428
        %s430 = sand.u32 %s105, 1
        %s431 = smul.addr %s430, 16
        %s432 = scalar_lea.vmem [#allocation10], %s431
        // Predicated region
        $region57: #{tpu_custom_call.1} parent=47 // pred_check
          %p433 = pneg %p118
        $region58: #{tpu_custom_call.1} parent=47 // pred_check_branch
          %435 = sbr.rel (%p433) target = $region60
        $region59: #{tpu_custom_call.1} parent=47 // pred_region
          %436 = dma.done %s429, 256
        $region60: #{tpu_custom_call.1} parent=47 // pred_fallthru
          _
        %s437 = sand.u32 %s33, 1
        %s438 = scalar_lea.sflag [#allocation12], %s437
        %s439 = sand.u32 %s131, 1
        %s440 = smul.addr %s439, 16
        %s441 = scalar_lea.vmem [#allocation11], %s440
        // Predicated region
        $region61: #{tpu_custom_call.1} parent=47 // pred_check
          %p442 = pneg %p144
        $region62: #{tpu_custom_call.1} parent=47 // pred_check_branch
          %444 = sbr.rel (%p442) target = $region64
        $region63: #{tpu_custom_call.1} parent=47 // pred_region
          %445 = dma.done %s438, 256
        $region64: #{tpu_custom_call.1} parent=47 // pred_fallthru
          _
        %s446 = sand.u32 %s33, 1
        %s447 = scalar_lea.sflag [#allocation12], %s446
        %s448 = sand.u32 %s157, 1
        %s449 = smul.addr %s448, 16
        %s450 = scalar_lea.vmem [#allocation13], %s449
        // Predicated region
        $region65: #{tpu_custom_call.1} parent=47 // pred_check
          %p451 = pneg %p170
        $region66: #{tpu_custom_call.1} parent=47 // pred_check_branch
          %453 = sbr.rel (%p451) target = $region68
        $region67: #{tpu_custom_call.1} parent=47 // pred_region
          %454 = dma.done %s447, 256
        $region68: #{tpu_custom_call.1} parent=47 // pred_fallthru
          _
        %s455 = sand.u32 %s33, 1
        %s456 = scalar_lea.sflag [#allocation15], %s455
        %s457 = sand.u32 %s183, 1
        %s458 = smul.addr %s457, 32
        %s459 = scalar_lea.vmem [#allocation14], %s458
        // Predicated region
        $region69: #{tpu_custom_call.1} parent=47 // pred_check
          %p460 = pneg %p196
        $region70: #{tpu_custom_call.1} parent=47 // pred_check_branch
          %462 = sbr.rel (%p460) target = $region72
        $region71: #{tpu_custom_call.1} parent=47 // pred_region
          %463 = dma.done %s456, 512
        $region72: #{tpu_custom_call.1} parent=47 // pred_fallthru
          _
        %s464 = sand.u32 %s33, 1
        %s465 = scalar_lea.sflag [#allocation15], %s464
        %s466 = sand.u32 %s209, 1
        %s467 = smul.addr %s466, 8
        %s468 = scalar_lea.vmem [#allocation16], %s467
        // Predicated region
        $region73: #{tpu_custom_call.1} parent=47 // pred_check
          %p469 = pneg %p222
        $region74: #{tpu_custom_call.1} parent=47 // pred_check_branch
          %471 = sbr.rel (%p469) target = $region76
        $region75: #{tpu_custom_call.1} parent=47 // pred_region
          %472 = dma.done %s465, 128
        $region76: #{tpu_custom_call.1} parent=47 // pred_fallthru
          _
        %s473 = sand.u32 %s53, 1
        %s474 = scalar_lea.sflag [#allocation6], %s473
        %s475 = sand.u32 %s53, 1
        %s476 = scalar_lea.vmem [#allocation5], %s475
        %p477 = pneg %p66
        %p478 = pneg %p63
        %s479 = sand.u32 %s33, 1
        %s480 = scalar_lea.sflag [#allocation9], %s479
        %s481 = sand.u32 %s79, 1
        %s482 = smul.addr %s481, 8
        %s483 = scalar_lea.vmem [#allocation8], %s482
        %p484 = pneg %p92
        %p485 = pneg %p89
        %s486 = sand.u32 %s33, 1
        %s487 = scalar_lea.sflag [#allocation9], %s486
        %s488 = sand.u32 %s105, 1
        %s489 = smul.addr %s488, 16
        %s490 = scalar_lea.vmem [#allocation10], %s489
        %p491 = pneg %p118
        %p492 = pneg %p115
        %s493 = sand.u32 %s33, 1
        %s494 = scalar_lea.sflag [#allocation12], %s493
        %s495 = sand.u32 %s131, 1
        %s496 = smul.addr %s495, 16
        %s497 = scalar_lea.vmem [#allocation11], %s496
        %p498 = pneg %p144
        %p499 = pneg %p141
        %s500 = sand.u32 %s33, 1
        %s501 = scalar_lea.sflag [#allocation12], %s500
        %s502 = sand.u32 %s157, 1
        %s503 = smul.addr %s502, 16
        %s504 = scalar_lea.vmem [#allocation13], %s503
        %p505 = pneg %p170
        %p506 = pneg %p167
        %s507 = sand.u32 %s33, 1
        %s508 = scalar_lea.sflag [#allocation15], %s507
        %s509 = sand.u32 %s183, 1
        %s510 = smul.addr %s509, 32
        %s511 = scalar_lea.vmem [#allocation14], %s510
        %p512 = pneg %p196
        %p513 = pneg %p193
        %s514 = sand.u32 %s33, 1
        %s515 = scalar_lea.sflag [#allocation15], %s514
        %s516 = sand.u32 %s209, 1
        %s517 = smul.addr %s516, 8
        %s518 = scalar_lea.vmem [#allocation16], %s517
        %p519 = pneg %p222
        %p520 = pneg %p219
        %p521 = pneg %p248
        %p522 = pneg %p245
        %s523 = sand.u32 %s235, 1
        %s524 = scalar_lea.sflag [#allocation7], %s523
        %s525 = sand.u32 %s235, 1
        %s526 = smul.addr %s525, 8
        %s527 = scalar_lea.vmem [#allocation17], %s526
        %p529 = scmp.eq.s32.totalorder %s38, 0
        // Predicated region
        $region77: #{tpu_custom_call.1} parent=47 // pred_check
          %p530 = pneg %p529
        $region78: #{tpu_custom_call.1} parent=47 // pred_check_branch
          %532 = sbr.rel (%p530) target = $region80
        $region79: #{tpu_custom_call.1} parent=47 // pred_region
          %v533 = vld [vmem:[%s423] sm:$0xff]
          %vm534 = vcmask 261120
          %535 = vst.msk [vmem:[%s527] sm:$0xff] %vm534, %v533
          %v536 = vlaneseq
          %v537 = vand.u32 %v536, 127
          %v538 = vld [vmem:[%s414] sm:$0x1]
          %539 = vset.pattern.permute.xlu0 0
          %540 = vperm.xlu0 %539, %v538
          %v541 = vpop.permute.xlu0 %540
          %v542 = vlaneseq
          %v543 = vshrl.u32 %v542, 7
          %v544 = vsub.s32 0, %v543
          %v545 = vrot.slane %v541, %v544
          %vm546 = vcmp.lt.s32.totalorder %v537, %v545
          %v547 = vsel %vm546, 1, 0
          %v548 = vcvt.s32.f32 %v547
          %vm549 = vcmask 57344
          %550 = vst.msk [vmem:[#allocation3] sm:$0x1] %vm549, %v548
          %v551 = vsub.f32 %v548, 1.0
          %v552 = vmul.f32 %v551, 1e+30
          %553 = vst.msk [vmem:[#allocation4] sm:$0x1] %vm549, %v552
        $region80: #{tpu_custom_call.1} parent=47 // pred_fallthru
          _
        %v554 = vld [vmem:[%s527] sm:$0xff]
        %v555 = vld [vmem:[%s468] sm:$0xff]
        %v556 = vpack.c.bf16 %v554, %v554
        %v557 = vld [vmem:[%s432] sm:$0xf]
        %v558 = vld [vmem:[%s432 + $0x4] sm:$0xf]
        %v559 = vld [vmem:[%s432 + $0x8] sm:$0xf]
        %v560 = vld [vmem:[%s432 + $0xc] sm:$0xf]
        %v561 = vlaneseq
        %v562 = vshrl.u32 %v561, 7
        %v563 = vsub.s32 0, %v562
        %v564 = vrot.slane %v555, %v563
        %v569 = vunpack.c.l.b16 %v557
        %v570 = vunpack.c.l.b16 %v558
        %v571 = vunpack.c.l.b16 %v559
        %v572 = vunpack.c.l.b16 %v560
        %v573 = vpack.c.b16 %v570, %v569
        %v574 = vpack.c.b16 %v572, %v571
        %vm577 = vcmask 261120
        %v579 = vsel %vm577, %v556, 0
        %581 = vmatprep.subr.bf16.mxu0 0
        %582 = vmatpush1.bf16.msra.mxu0 %v573
        %583 = vmatprep.subr.bf16.mxu0 0
        %584 = vmatpush1.bf16.msra.mxu0 %v574
        %585 = vmatprep.subr.bf16.mxu0 0
        %586 = vmatpush1.bf16.msra.mxu0 0
        %587 = vmatprep.subr.bf16.mxu0 0
        %588 = vmatpush1.bf16.msra.mxu0 0
        %589 = vmatprep.subr.bf16.mxu0 0
        %590 = vmatpush1.bf16.msra.mxu0 0
        %591 = vmatprep.subr.bf16.mxu0 0
        %592 = vmatpush1.bf16.msra.mxu0 0
        %593 = vmatprep.subr.bf16.mxu0 0
        %594 = vmatpush1.bf16.msra.mxu0 0
        %595 = vmatprep.subr.bf16.mxu0 0
        %596 = vmatpush1.bf16.msra.mxu0 0
        %597 = vmatprep.subr.bf16.mxu0 0
        %598 = vmatpush1.bf16.msra.mxu0 0
        %599 = vmatprep.subr.bf16.mxu0 0
        %600 = vmatpush1.bf16.msra.mxu0 0
        %601 = vmatprep.subr.bf16.mxu0 0
        %602 = vmatpush1.bf16.msra.mxu0 0
        %603 = vmatprep.subr.bf16.mxu0 0
        %604 = vmatpush1.bf16.msra.mxu0 0
        %605 = vmatprep.subr.bf16.mxu0 0
        %606 = vmatpush1.bf16.msra.mxu0 0
        %607 = vmatprep.subr.bf16.mxu0 0
        %608 = vmatpush1.bf16.msra.mxu0 0
        %609 = vmatprep.subr.bf16.mxu0 0
        %610 = vmatpush1.bf16.msra.mxu0 0
        %611 = vmatprep.subr.bf16.mxu0 0
        %612 = vmatpush1.bf16.msra.mxu0 0
        %613 = vmatprep.mubr.bf16.mxu0 0
        %614 = vmatmul.mubr.bf16.gmra.mrb[0].mxu0 %v579
        %v615 = vpop.f32.mrb[0].mxu0
        %v616 = vadd.f32 %v564, %v615
        %v617 = vpop.f32.mrb[0].mxu0
        %v618 = vpop.f32.mrb[0].mxu0
        %v619 = vpop.f32.mrb[0].mxu0
        %620 = vdwg.mxu0
        %v621 = vpack.c.bf16 %v616, %v616
        %v622 = vld [vmem:[#allocation3] sm:$0x1]
        %v623 = vld [vmem:[#allocation4] sm:$0x1]
        %625 = vrot.lane.b32.xlu0 %v621, 96
        %v626 = vpop.permute.xlu0 %625
        %vm627 = vcmask 64512
        %v629 = vsel %vm627, %v621, 0
        %v632 = vsel %vm627, %v626, 0
        %634 = vmatprep.subr.bf16.mxu0 0
        %635 = vmatpush1.bf16.xpose.msra.mxu0 %v632
        %636 = vmatprep.subr.bf16.mxu0 0
        %637 = vmatpush1.bf16.xpose.msra.mxu0 0
        %638 = vmatprep.subr.bf16.mxu0 0
        %639 = vmatpush1.bf16.xpose.msra.mxu0 0
        %640 = vmatprep.subr.bf16.mxu0 0
        %641 = vmatpush1.bf16.xpose.msra.mxu0 0
        %642 = vmatprep.subr.bf16.mxu0 0
        %643 = vmatpush1.bf16.xpose.msra.mxu0 0
        %644 = vmatprep.subr.bf16.mxu0 0
        %645 = vmatpush1.bf16.xpose.msra.mxu0 0
        %646 = vmatprep.subr.bf16.mxu0 0
        %647 = vmatpush1.bf16.xpose.msra.mxu0 0
        %648 = vmatprep.subr.bf16.mxu0 0
        %649 = vmatpush1.bf16.xpose.msra.mxu0 0
        %650 = vmatprep.subr.bf16.mxu0 0
        %651 = vmatpush1.bf16.xpose.msra.mxu0 0
        %652 = vmatprep.subr.bf16.mxu0 0
        %653 = vmatpush1.bf16.xpose.msra.mxu0 0
        %654 = vmatprep.subr.bf16.mxu0 0
        %655 = vmatpush1.bf16.xpose.msra.mxu0 0
        %656 = vmatprep.subr.bf16.mxu0 0
        %657 = vmatpush1.bf16.xpose.msra.mxu0 0
        %658 = vmatprep.subr.bf16.mxu0 0
        %659 = vmatpush1.bf16.xpose.msra.mxu0 0
        %660 = vmatprep.subr.bf16.mxu0 0
        %661 = vmatpush1.bf16.xpose.msra.mxu0 0
        %662 = vmatprep.subr.bf16.mxu0 0
        %663 = vmatpush1.bf16.xpose.msra.mxu0 0
        %664 = vmatprep.subr.bf16.mxu0 0
        %665 = vmatpush1.bf16.xpose.msra.mxu0 0
        %666 = vmatprep.mubr.bf16.mxu0 0
        %667 = vmatmul.mubr.bf16.gmra.mrb[0].mxu0 %v629
        %v668 = vpop.f32.mrb[0].mxu0
        %v669 = vadd.f32 0.0, %v668
        %v670 = vpop.f32.mrb[0].mxu0
        %v671 = vpop.f32.mrb[0].mxu0
        %v672 = vpop.f32.mrb[0].mxu0
        %673 = vdwg.mxu0
        %v674 = vmul.f32 %v669, 0.35355338
        %v676 = vlaneseq
        %v677 = vshrl.u32 %v676, 7
        %v678 = vsub.s32 0, %v677
        %v679 = vrot.slane %v623, %v678
        %v681 = vadd.f32 %v674, %v679
        %v682 = vsel %vm627, %v681, -inf
        %683 = vmax.xlane.f32.xlu0 %v682
        %v684 = vpop.xlane.xlu0 %683
        %v685 = vsub.f32 %v681, %v684
        %v686 = vmul.f32 %v685, 1.442695
        %v687 = vpow.pop %v686
        %v689 = vlaneseq
        %v690 = vshrl.u32 %v689, 7
        %v691 = vsub.s32 0, %v690
        %v692 = vrot.slane %v622, %v691
        %v694 = vmul.f32 %v687, %v692
        %v695 = vsel %vm627, %v694, 0.0
        %696 = vadd.xlane.f32.xlu0 %v695
        %v697 = vpop.xlane.xlu0 %696
        %v698 = vpack.c.bf16 %v694, %v694
        %699 = vrot.lane.b32.xlu0 %v621, 64
        %v700 = vpop.permute.xlu0 %699
        %v702 = vsel %vm627, %v698, 0
        %vm704 = vcmask 1043456
        %v706 = vsel %vm704, %v700, 0
        %708 = vmatprep.subr.bf16.mxu0 0
        %709 = vmatpush1.bf16.msra.mxu0 %v706
        %710 = vmatprep.subr.bf16.mxu0 0
        %711 = vmatpush1.bf16.msra.mxu0 0
        %712 = vmatprep.subr.bf16.mxu0 0
        %713 = vmatpush1.bf16.msra.mxu0 0
        %714 = vmatprep.subr.bf16.mxu0 0
        %715 = vmatpush1.bf16.msra.mxu0 0
        %716 = vmatprep.subr.bf16.mxu0 0
        %717 = vmatpush1.bf16.msra.mxu0 0
        %718 = vmatprep.subr.bf16.mxu0 0
        %719 = vmatpush1.bf16.msra.mxu0 0
        %720 = vmatprep.subr.bf16.mxu0 0
        %721 = vmatpush1.bf16.msra.mxu0 0
        %722 = vmatprep.subr.bf16.mxu0 0
        %723 = vmatpush1.bf16.msra.mxu0 0
        %724 = vmatprep.subr.bf16.mxu0 0
        %725 = vmatpush1.bf16.msra.mxu0 0
        %726 = vmatprep.subr.bf16.mxu0 0
        %727 = vmatpush1.bf16.msra.mxu0 0
        %728 = vmatprep.subr.bf16.mxu0 0
        %729 = vmatpush1.bf16.msra.mxu0 0
        %730 = vmatprep.subr.bf16.mxu0 0
        %731 = vmatpush1.bf16.msra.mxu0 0
        %732 = vmatprep.subr.bf16.mxu0 0
        %733 = vmatpush1.bf16.msra.mxu0 0
        %734 = vmatprep.subr.bf16.mxu0 0
        %735 = vmatpush1.bf16.msra.mxu0 0
        %736 = vmatprep.subr.bf16.mxu0 0
        %737 = vmatpush1.bf16.msra.mxu0 0
        %738 = vmatprep.subr.bf16.mxu0 0
        %739 = vmatpush1.bf16.msra.mxu0 0
        %740 = vmatprep.mubr.bf16.mxu0 0
        %741 = vmatmul.mubr.bf16.gmra.mrb[0].mxu0 %v702
        %v742 = vpop.f32.mrb[0].mxu0
        %v743 = vadd.f32 0.0, %v742
        %v744 = vpop.f32.mrb[0].mxu0
        %v745 = vpop.f32.mrb[0].mxu0
        %v746 = vpop.f32.mrb[0].mxu0
        %747 = vdwg.mxu0
        %v748 = vadd.f32 %v697, 1e-30
        %v749 = vrcp.pop %v748
        %v750 = vmul.f32 %v743, %v749
        %751 = vst.msk [vmem:[#allocation2] sm:$0xff] %vm627, %v750
        %752 = vrot.lane.b32.xlu0 %v621, 120
        %v753 = vpop.permute.xlu0 %752
        %754 = vrot.lane.b32.xlu0 %v621, 88
        %v755 = vpop.permute.xlu0 %754
        %v757 = vsel %vm627, %v753, 0
        %v760 = vsel %vm627, %v755, 0
        %762 = vmatprep.subr.bf16.mxu0 0
        %763 = vmatpush1.bf16.xpose.msra.mxu0 %v760
        %764 = vmatprep.subr.bf16.mxu0 0
        %765 = vmatpush1.bf16.xpose.msra.mxu0 0
        %766 = vmatprep.subr.bf16.mxu0 0
        %767 = vmatpush1.bf16.xpose.msra.mxu0 0
        %768 = vmatprep.subr.bf16.mxu0 0
        %769 = vmatpush1.bf16.xpose.msra.mxu0 0
        %770 = vmatprep.subr.bf16.mxu0 0
        %771 = vmatpush1.bf16.xpose.msra.mxu0 0
        %772 = vmatprep.subr.bf16.mxu0 0
        %773 = vmatpush1.bf16.xpose.msra.mxu0 0
        %774 = vmatprep.subr.bf16.mxu0 0
        %775 = vmatpush1.bf16.xpose.msra.mxu0 0
        %776 = vmatprep.subr.bf16.mxu0 0
        %777 = vmatpush1.bf16.xpose.msra.mxu0 0
        %778 = vmatprep.subr.bf16.mxu0 0
        %779 = vmatpush1.bf16.xpose.msra.mxu0 0
        %780 = vmatprep.subr.bf16.mxu0 0
        %781 = vmatpush1.bf16.xpose.msra.mxu0 0
        %782 = vmatprep.subr.bf16.mxu0 0
        %783 = vmatpush1.bf16.xpose.msra.mxu0 0
        %784 = vmatprep.subr.bf16.mxu0 0
        %785 = vmatpush1.bf16.xpose.msra.mxu0 0
        %786 = vmatprep.subr.bf16.mxu0 0
        %787 = vmatpush1.bf16.xpose.msra.mxu0 0
        %788 = vmatprep.subr.bf16.mxu0 0
        %789 = vmatpush1.bf16.xpose.msra.mxu0 0
        %790 = vmatprep.subr.bf16.mxu0 0
        %791 = vmatpush1.bf16.xpose.msra.mxu0 0
        %792 = vmatprep.subr.bf16.mxu0 0
        %793 = vmatpush1.bf16.xpose.msra.mxu0 0
        %794 = vmatprep.mubr.bf16.mxu0 0
        %795 = vmatmul.mubr.bf16.gmra.mrb[0].mxu0 %v757
        %v796 = vpop.f32.mrb[0].mxu0
        %v797 = vadd.f32 0.0, %v796
        %v798 = vpop.f32.mrb[0].mxu0
        %v799 = vpop.f32.mrb[0].mxu0
        %v800 = vpop.f32.mrb[0].mxu0
        %801 = vdwg.mxu0
        %v802 = vmul.f32 %v797, 0.35355338
        %v803 = vadd.f32 %v802, %v679
        %v804 = vsel %vm627, %v803, -inf
        %805 = vmax.xlane.f32.xlu0 %v804
        %v806 = vpop.xlane.xlu0 %805
        %v807 = vsub.f32 %v803, %v806
        %v808 = vmul.f32 %v807, 1.442695
        %v809 = vpow.pop %v808
        %v810 = vmul.f32 %v809, %v692
        %v811 = vsel %vm627, %v810, 0.0
        %812 = vadd.xlane.f32.xlu0 %v811
        %v813 = vpop.xlane.xlu0 %812
        %v814 = vpack.c.bf16 %v810, %v810
        %815 = vrot.lane.b32.xlu0 %v621, 56
        %v816 = vpop.permute.xlu0 %815
        %v818 = vsel %vm627, %v814, 0
        %v821 = vsel %vm704, %v816, 0
        %823 = vmatprep.subr.bf16.mxu0 0
        %824 = vmatpush1.bf16.msra.mxu0 %v821
        %825 = vmatprep.subr.bf16.mxu0 0
        %826 = vmatpush1.bf16.msra.mxu0 0
        %827 = vmatprep.subr.bf16.mxu0 0
        %828 = vmatpush1.bf16.msra.mxu0 0
        %829 = vmatprep.subr.bf16.mxu0 0
        %830 = vmatpush1.bf16.msra.mxu0 0
        %831 = vmatprep.subr.bf16.mxu0 0
        %832 = vmatpush1.bf16.msra.mxu0 0
        %833 = vmatprep.subr.bf16.mxu0 0
        %834 = vmatpush1.bf16.msra.mxu0 0
        %835 = vmatprep.subr.bf16.mxu0 0
        %836 = vmatpush1.bf16.msra.mxu0 0
        %837 = vmatprep.subr.bf16.mxu0 0
        %838 = vmatpush1.bf16.msra.mxu0 0
        %839 = vmatprep.subr.bf16.mxu0 0
        %840 = vmatpush1.bf16.msra.mxu0 0
        %841 = vmatprep.subr.bf16.mxu0 0
        %842 = vmatpush1.bf16.msra.mxu0 0
        %843 = vmatprep.subr.bf16.mxu0 0
        %844 = vmatpush1.bf16.msra.mxu0 0
        %845 = vmatprep.subr.bf16.mxu0 0
        %846 = vmatpush1.bf16.msra.mxu0 0
        %847 = vmatprep.subr.bf16.mxu0 0
        %848 = vmatpush1.bf16.msra.mxu0 0
        %849 = vmatprep.subr.bf16.mxu0 0
        %850 = vmatpush1.bf16.msra.mxu0 0
        %851 = vmatprep.subr.bf16.mxu0 0
        %852 = vmatpush1.bf16.msra.mxu0 0
        %853 = vmatprep.subr.bf16.mxu0 0
        %854 = vmatpush1.bf16.msra.mxu0 0
        %855 = vmatprep.mubr.bf16.mxu0 0
        %856 = vmatmul.mubr.bf16.gmra.mrb[0].mxu0 %v818
        %v857 = vpop.f32.mrb[0].mxu0
        %v858 = vadd.f32 0.0, %v857
        %v859 = vpop.f32.mrb[0].mxu0
        %v860 = vpop.f32.mrb[0].mxu0
        %v861 = vpop.f32.mrb[0].mxu0
        %862 = vdwg.mxu0
        %v863 = vadd.f32 %v813, 1e-30
        %v864 = vrcp.pop %v863
        %v865 = vmul.f32 %v858, %v864
        %867 = vrot.lane.b32.xlu0 %v865, 8
        %v868 = vpop.permute.xlu0 %867
        %vm870 = vcmask 130112
        %871 = vst.msk [vmem:[#allocation2] sm:$0xff] %vm870, %v868
        %872 = vrot.lane.b32.xlu0 %v621, 112
        %v873 = vpop.permute.xlu0 %872
        %874 = vrot.lane.b32.xlu0 %v621, 80
        %v875 = vpop.permute.xlu0 %874
        %v877 = vsel %vm627, %v873, 0
        %v880 = vsel %vm627, %v875, 0
        %882 = vmatprep.subr.bf16.mxu0 0
        %883 = vmatpush1.bf16.xpose.msra.mxu0 %v880
        %884 = vmatprep.subr.bf16.mxu0 0
        %885 = vmatpush1.bf16.xpose.msra.mxu0 0
        %886 = vmatprep.subr.bf16.mxu0 0
        %887 = vmatpush1.bf16.xpose.msra.mxu0 0
        %888 = vmatprep.subr.bf16.mxu0 0
        %889 = vmatpush1.bf16.xpose.msra.mxu0 0
        %890 = vmatprep.subr.bf16.mxu0 0
        %891 = vmatpush1.bf16.xpose.msra.mxu0 0
        %892 = vmatprep.subr.bf16.mxu0 0
        %893 = vmatpush1.bf16.xpose.msra.mxu0 0
        %894 = vmatprep.subr.bf16.mxu0 0
        %895 = vmatpush1.bf16.xpose.msra.mxu0 0
        %896 = vmatprep.subr.bf16.mxu0 0
        %897 = vmatpush1.bf16.xpose.msra.mxu0 0
        %898 = vmatprep.subr.bf16.mxu0 0
        %899 = vmatpush1.bf16.xpose.msra.mxu0 0
        %900 = vmatprep.subr.bf16.mxu0 0
        %901 = vmatpush1.bf16.xpose.msra.mxu0 0
        %902 = vmatprep.subr.bf16.mxu0 0
        %903 = vmatpush1.bf16.xpose.msra.mxu0 0
        %904 = vmatprep.subr.bf16.mxu0 0
        %905 = vmatpush1.bf16.xpose.msra.mxu0 0
        %906 = vmatprep.subr.bf16.mxu0 0
        %907 = vmatpush1.bf16.xpose.msra.mxu0 0
        %908 = vmatprep.subr.bf16.mxu0 0
        %909 = vmatpush1.bf16.xpose.msra.mxu0 0
        %910 = vmatprep.subr.bf16.mxu0 0
        %911 = vmatpush1.bf16.xpose.msra.mxu0 0
        %912 = vmatprep.subr.bf16.mxu0 0
        %913 = vmatpush1.bf16.xpose.msra.mxu0 0
        %914 = vmatprep.mubr.bf16.mxu0 0
        %915 = vmatmul.mubr.bf16.gmra.mrb[0].mxu0 %v877
        %v916 = vpop.f32.mrb[0].mxu0
        %v917 = vadd.f32 0.0, %v916
        %v918 = vpop.f32.mrb[0].mxu0
        %v919 = vpop.f32.mrb[0].mxu0
        %v920 = vpop.f32.mrb[0].mxu0
        %921 = vdwg.mxu0
        %v922 = vmul.f32 %v917, 0.35355338
        %v923 = vadd.f32 %v922, %v679
        %v924 = vsel %vm627, %v923, -inf
        %925 = vmax.xlane.f32.xlu0 %v924
        %v926 = vpop.xlane.xlu0 %925
        %v927 = vsub.f32 %v923, %v926
        %v928 = vmul.f32 %v927, 1.442695
        %v929 = vpow.pop %v928
        %v930 = vmul.f32 %v929, %v692
        %v931 = vsel %vm627, %v930, 0.0
        %932 = vadd.xlane.f32.xlu0 %v931
        %v933 = vpop.xlane.xlu0 %932
        %v934 = vpack.c.bf16 %v930, %v930
        %935 = vrot.lane.b32.xlu0 %v621, 48
        %v936 = vpop.permute.xlu0 %935
        %v938 = vsel %vm627, %v934, 0
        %v941 = vsel %vm704, %v936, 0
        %943 = vmatprep.subr.bf16.mxu0 0
        %944 = vmatpush1.bf16.msra.mxu0 %v941
        %945 = vmatprep.subr.bf16.mxu0 0
        %946 = vmatpush1.bf16.msra.mxu0 0
        %947 = vmatprep.subr.bf16.mxu0 0
        %948 = vmatpush1.bf16.msra.mxu0 0
        %949 = vmatprep.subr.bf16.mxu0 0
        %950 = vmatpush1.bf16.msra.mxu0 0
        %951 = vmatprep.subr.bf16.mxu0 0
        %952 = vmatpush1.bf16.msra.mxu0 0
        %953 = vmatprep.subr.bf16.mxu0 0
        %954 = vmatpush1.bf16.msra.mxu0 0
        %955 = vmatprep.subr.bf16.mxu0 0
        %956 = vmatpush1.bf16.msra.mxu0 0
        %957 = vmatprep.subr.bf16.mxu0 0
        %958 = vmatpush1.bf16.msra.mxu0 0
        %959 = vmatprep.subr.bf16.mxu0 0
        %960 = vmatpush1.bf16.msra.mxu0 0
        %961 = vmatprep.subr.bf16.mxu0 0
        %962 = vmatpush1.bf16.msra.mxu0 0
        %963 = vmatprep.subr.bf16.mxu0 0
        %964 = vmatpush1.bf16.msra.mxu0 0
        %965 = vmatprep.subr.bf16.mxu0 0
        %966 = vmatpush1.bf16.msra.mxu0 0
        %967 = vmatprep.subr.bf16.mxu0 0
        %968 = vmatpush1.bf16.msra.mxu0 0
        %969 = vmatprep.subr.bf16.mxu0 0
        %970 = vmatpush1.bf16.msra.mxu0 0
        %971 = vmatprep.subr.bf16.mxu0 0
        %972 = vmatpush1.bf16.msra.mxu0 0
        %973 = vmatprep.subr.bf16.mxu0 0
        %974 = vmatpush1.bf16.msra.mxu0 0
        %975 = vmatprep.mubr.bf16.mxu0 0
        %976 = vmatmul.mubr.bf16.gmra.mrb[0].mxu0 %v938
        %v977 = vpop.f32.mrb[0].mxu0
        %v978 = vadd.f32 0.0, %v977
        %v979 = vpop.f32.mrb[0].mxu0
        %v980 = vpop.f32.mrb[0].mxu0
        %v981 = vpop.f32.mrb[0].mxu0
        %982 = vdwg.mxu0
        %v983 = vadd.f32 %v933, 1e-30
        %v984 = vrcp.pop %v983
        %v985 = vmul.f32 %v978, %v984
        %987 = vrot.lane.b32.xlu0 %v985, 16
        %v988 = vpop.permute.xlu0 %987
        %vm990 = vcmask 195712
        %991 = vst.msk [vmem:[#allocation2] sm:$0xff] %vm990, %v988
        %992 = vrot.lane.b32.xlu0 %v621, 104
        %v993 = vpop.permute.xlu0 %992
        %994 = vrot.lane.b32.xlu0 %v621, 72
        %v995 = vpop.permute.xlu0 %994
        %v997 = vsel %vm627, %v993, 0
        %v1000 = vsel %vm627, %v995, 0
        %1002 = vmatprep.subr.bf16.mxu0 0
        %1003 = vmatpush1.bf16.xpose.msra.mxu0 %v1000
        %1004 = vmatprep.subr.bf16.mxu0 0
        %1005 = vmatpush1.bf16.xpose.msra.mxu0 0
        %1006 = vmatprep.subr.bf16.mxu0 0
        %1007 = vmatpush1.bf16.xpose.msra.mxu0 0
        %1008 = vmatprep.subr.bf16.mxu0 0
        %1009 = vmatpush1.bf16.xpose.msra.mxu0 0
        %1010 = vmatprep.subr.bf16.mxu0 0
        %1011 = vmatpush1.bf16.xpose.msra.mxu0 0
        %1012 = vmatprep.subr.bf16.mxu0 0
        %1013 = vmatpush1.bf16.xpose.msra.mxu0 0
        %1014 = vmatprep.subr.bf16.mxu0 0
        %1015 = vmatpush1.bf16.xpose.msra.mxu0 0
        %1016 = vmatprep.subr.bf16.mxu0 0
        %1017 = vmatpush1.bf16.xpose.msra.mxu0 0
        %1018 = vmatprep.subr.bf16.mxu0 0
        %1019 = vmatpush1.bf16.xpose.msra.mxu0 0
        %1020 = vmatprep.subr.bf16.mxu0 0
        %1021 = vmatpush1.bf16.xpose.msra.mxu0 0
        %1022 = vmatprep.subr.bf16.mxu0 0
        %1023 = vmatpush1.bf16.xpose.msra.mxu0 0
        %1024 = vmatprep.subr.bf16.mxu0 0
        %1025 = vmatpush1.bf16.xpose.msra.mxu0 0
        %1026 = vmatprep.subr.bf16.mxu0 0
        %1027 = vmatpush1.bf16.xpose.msra.mxu0 0
        %1028 = vmatprep.subr.bf16.mxu0 0
        %1029 = vmatpush1.bf16.xpose.msra.mxu0 0
        %1030 = vmatprep.subr.bf16.mxu0 0
        %1031 = vmatpush1.bf16.xpose.msra.mxu0 0
        %1032 = vmatprep.subr.bf16.mxu0 0
        %1033 = vmatpush1.bf16.xpose.msra.mxu0 0
        %1034 = vmatprep.mubr.bf16.mxu0 0
        %1035 = vmatmul.mubr.bf16.gmra.mrb[0].mxu0 %v997
        %v1036 = vpop.f32.mrb[0].mxu0
        %v1037 = vadd.f32 0.0, %v1036
        %v1038 = vpop.f32.mrb[0].mxu0
        %v1039 = vpop.f32.mrb[0].mxu0
        %v1040 = vpop.f32.mrb[0].mxu0
        %1041 = vdwg.mxu0
        %v1042 = vmul.f32 %v1037, 0.35355338
        %v1043 = vadd.f32 %v1042, %v679
        %v1044 = vsel %vm627, %v1043, -inf
        %1045 = vmax.xlane.f32.xlu0 %v1044
        %v1046 = vpop.xlane.xlu0 %1045
        %v1047 = vsub.f32 %v1043, %v1046
        %v1048 = vmul.f32 %v1047, 1.442695
        %v1049 = vpow.pop %v1048
        %v1050 = vmul.f32 %v1049, %v692
        %v1051 = vsel %vm627, %v1050, 0.0
        %1052 = vadd.xlane.f32.xlu0 %v1051
        %v1053 = vpop.xlane.xlu0 %1052
        %v1054 = vpack.c.bf16 %v1050, %v1050
        %1055 = vrot.lane.b32.xlu0 %v621, 40
        %v1056 = vpop.permute.xlu0 %1055
        %v1058 = vsel %vm627, %v1054, 0
        %v1061 = vsel %vm704, %v1056, 0
        %1063 = vmatprep.subr.bf16.mxu0 0
        %1064 = vmatpush1.bf16.msra.mxu0 %v1061
        %1065 = vmatprep.subr.bf16.mxu0 0
        %1066 = vmatpush1.bf16.msra.mxu0 0
        %1067 = vmatprep.subr.bf16.mxu0 0
        %1068 = vmatpush1.bf16.msra.mxu0 0
        %1069 = vmatprep.subr.bf16.mxu0 0
        %1070 = vmatpush1.bf16.msra.mxu0 0
        %1071 = vmatprep.subr.bf16.mxu0 0
        %1072 = vmatpush1.bf16.msra.mxu0 0
        %1073 = vmatprep.subr.bf16.mxu0 0
        %1074 = vmatpush1.bf16.msra.mxu0 0
        %1075 = vmatprep.subr.bf16.mxu0 0
        %1076 = vmatpush1.bf16.msra.mxu0 0
        %1077 = vmatprep.subr.bf16.mxu0 0
        %1078 = vmatpush1.bf16.msra.mxu0 0
        %1079 = vmatprep.subr.bf16.mxu0 0
        %1080 = vmatpush1.bf16.msra.mxu0 0
        %1081 = vmatprep.subr.bf16.mxu0 0
        %1082 = vmatpush1.bf16.msra.mxu0 0
        %1083 = vmatprep.subr.bf16.mxu0 0
        %1084 = vmatpush1.bf16.msra.mxu0 0
        %1085 = vmatprep.subr.bf16.mxu0 0
        %1086 = vmatpush1.bf16.msra.mxu0 0
        %1087 = vmatprep.subr.bf16.mxu0 0
        %1088 = vmatpush1.bf16.msra.mxu0 0
        %1089 = vmatprep.subr.bf16.mxu0 0
        %1090 = vmatpush1.bf16.msra.mxu0 0
        %1091 = vmatprep.subr.bf16.mxu0 0
        %1092 = vmatpush1.bf16.msra.mxu0 0
        %1093 = vmatprep.subr.bf16.mxu0 0
        %1094 = vmatpush1.bf16.msra.mxu0 0
        %1095 = vmatprep.mubr.bf16.mxu0 0
        %1096 = vmatmul.mubr.bf16.gmra.mrb[0].mxu0 %v1058
        %v1097 = vpop.f32.mrb[0].mxu0
        %v1098 = vadd.f32 0.0, %v1097
        %v1099 = vpop.f32.mrb[0].mxu0
        %v1100 = vpop.f32.mrb[0].mxu0
        %v1101 = vpop.f32.mrb[0].mxu0
        %1102 = vdwg.mxu0
        %v1103 = vadd.f32 %v1053, 1e-30
        %v1104 = vrcp.pop %v1103
        %v1105 = vmul.f32 %v1098, %v1104
        %1107 = vrot.lane.b32.xlu0 %v1105, 24
        %v1108 = vpop.permute.xlu0 %1107
        %vm1110 = vcmask 261312
        %1111 = vst.msk [vmem:[#allocation2] sm:$0xff] %vm1110, %v1108
        %v1112 = vld [vmem:[#allocation2] sm:$0xff]
        %v1113 = vpack.c.bf16 %v1112, %v1112
        %v1114 = vld [vmem:[%s441] sm:$0xf]
        %v1115 = vld [vmem:[%s441 + $0x4] sm:$0xf]
        %v1116 = vld [vmem:[%s441 + $0x8] sm:$0xf]
        %v1117 = vld [vmem:[%s441 + $0xc] sm:$0xf]
        %v1118 = vlaneseq
        %v1119 = vshrl.u32 %v1118, 7
        %v1120 = vsub.s32 1, %v1119
        %v1121 = vrot.slane %v555, %v1120
        %v1126 = vunpack.c.l.b16 %v1114
        %v1127 = vunpack.c.l.b16 %v1115
        %v1128 = vunpack.c.l.b16 %v1116
        %v1129 = vunpack.c.l.b16 %v1117
        %v1130 = vpack.c.b16 %v1127, %v1126
        %v1131 = vpack.c.b16 %v1129, %v1128
        %v1135 = vsel %vm577, %v1113, 0
        %1137 = vmatprep.subr.bf16.mxu0 0
        %1138 = vmatpush1.bf16.msra.mxu0 %v1130
        %1139 = vmatprep.subr.bf16.mxu0 0
        %1140 = vmatpush1.bf16.msra.mxu0 %v1131
        %1141 = vmatprep.subr.bf16.mxu0 0
        %1142 = vmatpush1.bf16.msra.mxu0 0
        %1143 = vmatprep.subr.bf16.mxu0 0
        %1144 = vmatpush1.bf16.msra.mxu0 0
        %1145 = vmatprep.subr.bf16.mxu0 0
        %1146 = vmatpush1.bf16.msra.mxu0 0
        %1147 = vmatprep.subr.bf16.mxu0 0
        %1148 = vmatpush1.bf16.msra.mxu0 0
        %1149 = vmatprep.subr.bf16.mxu0 0
        %1150 = vmatpush1.bf16.msra.mxu0 0
        %1151 = vmatprep.subr.bf16.mxu0 0
        %1152 = vmatpush1.bf16.msra.mxu0 0
        %1153 = vmatprep.subr.bf16.mxu0 0
        %1154 = vmatpush1.bf16.msra.mxu0 0
        %1155 = vmatprep.subr.bf16.mxu0 0
        %1156 = vmatpush1.bf16.msra.mxu0 0
        %1157 = vmatprep.subr.bf16.mxu0 0
        %1158 = vmatpush1.bf16.msra.mxu0 0
        %1159 = vmatprep.subr.bf16.mxu0 0
        %1160 = vmatpush1.bf16.msra.mxu0 0
        %1161 = vmatprep.subr.bf16.mxu0 0
        %1162 = vmatpush1.bf16.msra.mxu0 0
        %1163 = vmatprep.subr.bf16.mxu0 0
        %1164 = vmatpush1.bf16.msra.mxu0 0
        %1165 = vmatprep.subr.bf16.mxu0 0
        %1166 = vmatpush1.bf16.msra.mxu0 0
        %1167 = vmatprep.subr.bf16.mxu0 0
        %1168 = vmatpush1.bf16.msra.mxu0 0
        %1169 = vmatprep.mubr.bf16.mxu0 0
        %1170 = vmatmul.mubr.bf16.gmra.mrb[0].mxu0 %v1135
        %v1171 = vpop.f32.mrb[0].mxu0
        %v1172 = vadd.f32 %v1121, %v1171
        %v1173 = vpop.f32.mrb[0].mxu0
        %v1174 = vpop.f32.mrb[0].mxu0
        %v1175 = vpop.f32.mrb[0].mxu0
        %1176 = vdwg.mxu0
        %v1177 = vadd.f32 %v554, %v1172
        %v1178 = vsel %vm577, %v1177, 0.0
        %1179 = vadd.xlane.f32.xlu0 %v1178
        %v1180 = vpop.xlane.xlu0 %1179
        %v1181 = vrcp.pop 32.0
        %v1182 = vmul.f32 %v1180, %v1181
        %v1183 = vsub.f32 %v1177, %v1182
        %v1184 = vmul.f32 %v1183, %v1183
        %v1185 = vsel %vm577, %v1184, 0.0
        %1186 = vadd.xlane.f32.xlu0 %v1185
        %v1187 = vpop.xlane.xlu0 %1186
        %v1188 = vmul.f32 %v1187, %v1181
        %v1189 = vadd.f32 %v1188, 1e-05
        %v1190 = vrsqrt.pop %v1189
        %v1191 = vmul.f32 %v1183, %v1190
        %v1192 = vlaneseq
        %v1193 = vshrl.u32 %v1192, 7
        %v1194 = vsub.s32 2, %v1193
        %v1195 = vrot.slane %v555, %v1194
        %v1196 = vmul.f32 %v1191, %v1195
        %v1197 = vlaneseq
        %v1198 = vshrl.u32 %v1197, 7
        %v1199 = vsub.s32 3, %v1198
        %v1200 = vrot.slane %v555, %v1199
        %v1201 = vadd.f32 %v1196, %v1200
        %v1202 = vpack.c.bf16 %v1201, %v1201
        %v1203 = vld [vmem:[%s450] sm:$0xf]
        %v1204 = vld [vmem:[%s450 + $0x4] sm:$0xf]
        %v1205 = vld [vmem:[%s450 + $0x8] sm:$0xf]
        %v1206 = vld [vmem:[%s450 + $0xc] sm:$0xf]
        %v1207 = vlaneseq
        %v1208 = vshrl.u32 %v1207, 7
        %v1209 = vsub.s32 4, %v1208
        %v1210 = vrot.slane %v555, %v1209
        %v1215 = vunpack.c.l.b16 %v1203
        %v1216 = vunpack.c.l.b16 %v1204
        %v1217 = vunpack.c.l.b16 %v1205
        %v1218 = vunpack.c.l.b16 %v1206
        %v1219 = vpack.c.b16 %v1216, %v1215
        %v1220 = vpack.c.b16 %v1218, %v1217
        %v1224 = vsel %vm577, %v1202, 0
        %1226 = vmatprep.subr.bf16.mxu0 0
        %1227 = vmatpush1.bf16.msra.mxu0 %v1219
        %1228 = vmatprep.subr.bf16.mxu0 0
        %1229 = vmatpush1.bf16.msra.mxu0 %v1220
        %1230 = vmatprep.subr.bf16.mxu0 0
        %1231 = vmatpush1.bf16.msra.mxu0 0
        %1232 = vmatprep.subr.bf16.mxu0 0
        %1233 = vmatpush1.bf16.msra.mxu0 0
        %1234 = vmatprep.subr.bf16.mxu0 0
        %1235 = vmatpush1.bf16.msra.mxu0 0
        %1236 = vmatprep.subr.bf16.mxu0 0
        %1237 = vmatpush1.bf16.msra.mxu0 0
        %1238 = vmatprep.subr.bf16.mxu0 0
        %1239 = vmatpush1.bf16.msra.mxu0 0
        %1240 = vmatprep.subr.bf16.mxu0 0
        %1241 = vmatpush1.bf16.msra.mxu0 0
        %1242 = vmatprep.subr.bf16.mxu0 0
        %1243 = vmatpush1.bf16.msra.mxu0 0
        %1244 = vmatprep.subr.bf16.mxu0 0
        %1245 = vmatpush1.bf16.msra.mxu0 0
        %1246 = vmatprep.subr.bf16.mxu0 0
        %1247 = vmatpush1.bf16.msra.mxu0 0
        %1248 = vmatprep.subr.bf16.mxu0 0
        %1249 = vmatpush1.bf16.msra.mxu0 0
        %1250 = vmatprep.subr.bf16.mxu0 0
        %1251 = vmatpush1.bf16.msra.mxu0 0
        %1252 = vmatprep.subr.bf16.mxu0 0
        %1253 = vmatpush1.bf16.msra.mxu0 0
        %1254 = vmatprep.subr.bf16.mxu0 0
        %1255 = vmatpush1.bf16.msra.mxu0 0
        %1256 = vmatprep.subr.bf16.mxu0 0
        %1257 = vmatpush1.bf16.msra.mxu0 0
        %1258 = vmatprep.mubr.bf16.mxu0 0
        %1259 = vmatmul.mubr.bf16.gmra.mrb[0].mxu0 %v1224
        %v1260 = vpop.f32.mrb[0].mxu0
        %v1261 = vadd.f32 %v1210, %v1260
        %v1262 = vpop.f32.mrb[0].mxu0
        %v1263 = vpop.f32.mrb[0].mxu0
        %v1264 = vpop.f32.mrb[0].mxu0
        %1265 = vdwg.mxu0
        %v1266 = vmax.f32 %v1261, 0.0
        %v1267 = vpack.c.bf16 %v1266, %v1266
        %v1268 = vld [vmem:[%s459] sm:$0xf]
        %v1269 = vld [vmem:[%s459 + $0x4] sm:$0xf]
        %v1270 = vld [vmem:[%s459 + $0x8] sm:$0xf]
        %v1271 = vld [vmem:[%s459 + $0xc] sm:$0xf]
        %v1272 = vld [vmem:[%s459 + $0x10] sm:$0xf]
        %v1273 = vld [vmem:[%s459 + $0x14] sm:$0xf]
        %v1274 = vld [vmem:[%s459 + $0x18] sm:$0xf]
        %v1275 = vld [vmem:[%s459 + $0x1c] sm:$0xf]
        %v1276 = vlaneseq
        %v1277 = vshrl.u32 %v1276, 7
        %v1278 = vsub.s32 5, %v1277
        %v1279 = vrot.slane %v555, %v1278
        %v1288 = vunpack.c.l.b16 %v1268
        %v1289 = vunpack.c.l.b16 %v1269
        %v1290 = vunpack.c.l.b16 %v1270
        %v1291 = vunpack.c.l.b16 %v1271
        %v1292 = vunpack.c.l.b16 %v1272
        %v1293 = vunpack.c.l.b16 %v1273
        %v1294 = vunpack.c.l.b16 %v1274
        %v1295 = vunpack.c.l.b16 %v1275
        %v1296 = vpack.c.b16 %v1289, %v1288
        %v1297 = vpack.c.b16 %v1291, %v1290
        %v1298 = vpack.c.b16 %v1293, %v1292
        %v1299 = vpack.c.b16 %v1295, %v1294
        %vm1304 = vcmask 523264
        %v1306 = vsel %vm1304, %v1267, 0
        %1308 = vmatprep.subr.bf16.mxu0 0
        %1309 = vmatpush1.bf16.msra.mxu0 %v1296
        %1310 = vmatprep.subr.bf16.mxu0 0
        %1311 = vmatpush1.bf16.msra.mxu0 %v1297
        %1312 = vmatprep.subr.bf16.mxu0 0
        %1313 = vmatpush1.bf16.msra.mxu0 %v1298
        %1314 = vmatprep.subr.bf16.mxu0 0
        %1315 = vmatpush1.bf16.msra.mxu0 %v1299
        %1316 = vmatprep.subr.bf16.mxu0 0
        %1317 = vmatpush1.bf16.msra.mxu0 0
        %1318 = vmatprep.subr.bf16.mxu0 0
        %1319 = vmatpush1.bf16.msra.mxu0 0
        %1320 = vmatprep.subr.bf16.mxu0 0
        %1321 = vmatpush1.bf16.msra.mxu0 0
        %1322 = vmatprep.subr.bf16.mxu0 0
        %1323 = vmatpush1.bf16.msra.mxu0 0
        %1324 = vmatprep.subr.bf16.mxu0 0
        %1325 = vmatpush1.bf16.msra.mxu0 0
        %1326 = vmatprep.subr.bf16.mxu0 0
        %1327 = vmatpush1.bf16.msra.mxu0 0
        %1328 = vmatprep.subr.bf16.mxu0 0
        %1329 = vmatpush1.bf16.msra.mxu0 0
        %1330 = vmatprep.subr.bf16.mxu0 0
        %1331 = vmatpush1.bf16.msra.mxu0 0
        %1332 = vmatprep.subr.bf16.mxu0 0
        %1333 = vmatpush1.bf16.msra.mxu0 0
        %1334 = vmatprep.subr.bf16.mxu0 0
        %1335 = vmatpush1.bf16.msra.mxu0 0
        %1336 = vmatprep.subr.bf16.mxu0 0
        %1337 = vmatpush1.bf16.msra.mxu0 0
        %1338 = vmatprep.subr.bf16.mxu0 0
        %1339 = vmatpush1.bf16.msra.mxu0 0
        %1340 = vmatprep.mubr.bf16.mxu0 0
        %1341 = vmatmul.mubr.bf16.gmra.mrb[0].mxu0 %v1306
        %v1342 = vpop.f32.mrb[0].mxu0
        %v1343 = vadd.f32 %v1279, %v1342
        %v1344 = vpop.f32.mrb[0].mxu0
        %v1345 = vpop.f32.mrb[0].mxu0
        %v1346 = vpop.f32.mrb[0].mxu0
        %1347 = vdwg.mxu0
        %v1348 = vadd.f32 %v1201, %v1343
        %v1349 = vsel %vm577, %v1348, 0.0
        %1350 = vadd.xlane.f32.xlu0 %v1349
        %v1351 = vpop.xlane.xlu0 %1350
        %v1352 = vmul.f32 %v1351, %v1181
        %v1353 = vsub.f32 %v1348, %v1352
        %v1354 = vmul.f32 %v1353, %v1353
        %v1355 = vsel %vm577, %v1354, 0.0
        %1356 = vadd.xlane.f32.xlu0 %v1355
        %v1357 = vpop.xlane.xlu0 %1356
        %v1358 = vmul.f32 %v1357, %v1181
        %v1359 = vadd.f32 %v1358, 1e-05
        %v1360 = vrsqrt.pop %v1359
        %v1361 = vmul.f32 %v1353, %v1360
        %v1362 = vlaneseq
        %v1363 = vshrl.u32 %v1362, 7
        %v1364 = vsub.s32 6, %v1363
        %v1365 = vrot.slane %v555, %v1364
        %v1366 = vmul.f32 %v1361, %v1365
        %v1367 = vlaneseq
        %v1368 = vshrl.u32 %v1367, 7
        %v1369 = vsub.s32 7, %v1368
        %v1370 = vrot.slane %v555, %v1369
        %v1371 = vadd.f32 %v1366, %v1370
        %1372 = vst.msk [vmem:[%s527] sm:$0xff] %vm577, %v1371
        %s1373 = sand.u32 %s235, 1
        %s1374 = scalar_lea.sflag [#allocation7], %s1373
        %s1375 = sand.u32 %s235, 1
        %s1376 = smul.addr %s1375, 8
        %s1377 = scalar_lea.vmem [#allocation17], %s1376
        // Predicated region
        $region81: #{tpu_custom_call.1} parent=47 // pred_check
          %p1378 = pneg %p245
        $region82: #{tpu_custom_call.1} parent=47 // pred_check_branch
          %1380 = sbr.rel (%p1378) target = $region84
        $region83: #{tpu_custom_call.1} parent=47 // pred_region
          %s1382 = ssub.s32 128, 128
          %1383 = vsyncadd %s1374, %s1382
          %s1384 = smul.addr %s37, 128
          %s1385 = scalar_lea.hbm %s7, %s1384
          %s1387 = sshll.u32 %s1377, 4
          %s1388 = int_to_ptr.vmem [resolvable:$true] %s1387
          %1390 = dma.vmem_to_hbm [thread:$0]  %s1388, 128, %s1385, %s1374
        $region84: #{tpu_custom_call.1} parent=47 // pred_fallthru
          _
      $region48: #{tpu_custom_call.1} parent=5 // pred_fallthru
        _
      %p1391 = scmp.le.s32.totalorder 2, %s28
      // Predicated region
      $region85: #{tpu_custom_call.1} parent=5 // pred_check
        %p1392 = pneg %p1391
      $region86: #{tpu_custom_call.1} parent=5 // pred_check_branch
        %1394 = sbr.rel (%p1392) target = $region88
      $region87: #{tpu_custom_call.1} parent=5 // pred_region
        %s1395 = ssub.s32 %s28, 2
        // Predicated region
        $region89: #{tpu_custom_call.1} parent=87 // pred_check
          %p1396 = pneg %p251
        $region90: #{tpu_custom_call.1} parent=87 // pred_check_branch
          %1398 = sbr.rel (%p1396) target = $region92
        $region91: #{tpu_custom_call.1} parent=87 // pred_region
          %s1399 = sand.u32 %s236, 1
          %s1400 = scalar_lea.sflag [#allocation7], %s1399
          %s1401 = sand.u32 %s236, 1
          %s1402 = smul.addr %s1401, 8
          %s1403 = scalar_lea.vmem [#allocation17], %s1402
          %1404 = dma.done %s1400, 128
        $region92: #{tpu_custom_call.1} parent=87 // pred_fallthru
          _
      $region88: #{tpu_custom_call.1} parent=5 // pred_fallthru
        _
    $region6: #{tpu_custom_call.1} parent=1 // loop_footer
      %s32 = sadd.s32 1, %s28
    $region7: #{tpu_custom_call.1} parent=1 // loop_footer_branch
      %27 = sbr.rel target = $region3
    $region8: #{tpu_custom_call.1} parent=1 // loop_exit
      _
    %1405 = vsyncpa [#allocation6], 1
    %s1406 = scalar_lea.sflag [#allocation6], 1
    %1407 = vsyncpa %s1406, 1
    %1408 = vsyncpa [#allocation9], 1
    %s1409 = scalar_lea.sflag [#allocation9], 1
    %1410 = vsyncpa %s1409, 1
    %1411 = vsyncpa [#allocation12], 1
    %s1412 = scalar_lea.sflag [#allocation12], 1
    %1413 = vsyncpa %s1412, 1
    %1414 = vsyncpa [#allocation15], 1
    %s1415 = scalar_lea.sflag [#allocation15], 1
    %1416 = vsyncpa %s1415, 1
    %1417 = vsyncpa [#allocation7], 1
    %s1418 = scalar_lea.sflag [#allocation7], 1
    %1419 = vsyncpa %s1418, 1

</llo_original>
